<compile_context>
chip_gen: v7x
topology: tpu7x:2x2x1
jax: 0.10.0
libtpu: 0.0.40
codegen_flags: <defaults>
</compile_context>

<pallas_src>
import functools

import jax
import jax.numpy as jnp
from jax.experimental import pallas as pl
from jax.experimental.pallas import tpu as pltpu

NZ = 2
D_IN = 28 * 28                                    # 784
ENC_DIMS = [D_IN, 128, 64, 12, NZ]                # encoder: 784->128->64->12->nz
DEC_DIMS = [NZ, 12, 64, 128, D_IN]                # decoder: nz->12->64->128->784

_ENC_PAIRS = list(zip(ENC_DIMS[:-1], ENC_DIMS[1:]))
_DEC_PAIRS = list(zip(DEC_DIMS[:-1], DEC_DIMS[1:]))
_ALL_PAIRS = _ENC_PAIRS + _DEC_PAIRS
_N_LAYERS = len(_ALL_PAIRS)                       # 8


def _pad_hidden(d):
    """Lane-pad *internal* feature dims: 2 / 12 -> 128; 64 / 128 stay."""
    if d in (64, 128):
        return d
    return ((d + 127) // 128) * 128


def _padded_pairs():
    """(in_pad, out_pad) per layer. Layer-1 input and layer-8 output stay 784
    (unpadded HBM-facing dims); hidden dims are lane-padded."""
    pairs = []
    for li, (fi, fo) in enumerate(_ALL_PAIRS):
        in_p = fi if li == 0 else _pad_hidden(fi)
        out_p = fo if li == _N_LAYERS - 1 else _pad_hidden(fo)
        pairs.append((in_p, out_p))
    return pairs


def _autoencoder_kernel(x_ref,
                        # encoder weights/biases (W: (in_pad, out_pad) bf16, b: (1, out_pad) f32)
                        we1, be1, we2, be2, we3, be3, we4, be4,
                        # decoder weights/biases
                        wd1, bd1, wd2, bd2, wd3, bd3, wd4, bd4,
                        enc_ref, dec_ref):
    def lin(h, w_ref, b_ref):
        # bf16 MXU operands, f32 accumulation, f32 bias add / activations.
        return jnp.dot(h.astype(jnp.bfloat16), w_ref[...],
                       preferred_element_type=jnp.float32) + b_ref[...]

    x = x_ref[...]                                # (TB, 784) bf16

    # ---- encoder ----
    h = jnp.tanh(lin(x, we1, be1))
    h = jnp.tanh(lin(h, we2, be2))
    h = jnp.tanh(lin(h, we3, be3))
    encoded = lin(h, we4, be4)                    # (TB, 128); lanes >= NZ are exactly 0
    enc_ref[...] = encoded[:, :NZ].astype(enc_ref.dtype)

    # ---- decoder ----
    h = jnp.tanh(lin(encoded, wd1, bd1))
    h = jnp.tanh(lin(h, wd2, bd2))
    h = jnp.tanh(lin(h, wd3, bd3))
    dec_ref[...] = jax.nn.sigmoid(lin(h, wd4, bd4)).astype(dec_ref.dtype)


def init_params(key):
    """PyTorch-equivalent init: nn.Linear(in, out) with U(-1/sqrt(in), 1/sqrt(in)).

    Stored transposed as W: (in, out), b: (out,) so forward is x @ W + b.
    """
    params = []
    for fan_in, fan_out in _ALL_PAIRS:
        key, kw, kb = jax.random.split(key, 3)
        bound = 1.0 / float(fan_in) ** 0.5
        w = jax.random.uniform(kw, (fan_in, fan_out), jnp.float32, -bound, bound)
        b = jax.random.uniform(kb, (fan_out,), jnp.float32, -bound, bound)
        params.append((w, b))
    return params


def prepare_params(params):
    """One-time conversion: zero-pad hidden dims to lane-dense shapes, weights -> bf16.

    Zero padding keeps the math exact (padded rows/cols contribute 0)."""
    flat = []
    for (w, b), (in_p, out_p) in zip(params, _padded_pairs()):
        fan_in, fan_out = w.shape
        w_p = jnp.zeros((in_p, out_p), jnp.bfloat16)
        w_p = w_p.at[:fan_in, :fan_out].set(w.astype(jnp.bfloat16))
        b_p = jnp.zeros((1, out_p), jnp.float32).at[0, :fan_out].set(b)
        flat.append(w_p)
        flat.append(b_p)
    return tuple(flat)                            # 16 arrays


def _pick_batch_tile(B):
    # Small/medium batch: one grid step; block dim == full array dim is always
    # legal (no TB > B, no partial block).
    if B <= 512:
        return B
    # Large batch: biggest tile <= 512 (multiple of 16 for bf16 sublane
    # packing) that divides B exactly; otherwise fall back to 512 (partial
    # final block is handled by masked writes).
    for tb in (512, 384, 256, 128, 64, 32, 16):
        if B % tb == 0:
            return tb
    return 512


def _batch_map(i):
    return (i, 0)


def _resident_map(i):                             # weights/biases stay in VMEM
    return (0, 0)


@functools.partial(jax.jit, static_argnames=("tile_b",))
def autoencoder_forward(x, flat_params, tile_b=None):
    B = x.shape[0]
    TB = tile_b if tile_b is not None else _pick_batch_tile(B)
    num_tiles = pl.cdiv(B, TB)

    # Cast once to bf16: halves input DMA; the first matmul consumes bf16 anyway.
    x_bf = x.astype(jnp.bfloat16)

    in_specs = [pl.BlockSpec((TB, D_IN), _batch_map)]
    in_specs += [pl.BlockSpec(a.shape, _resident_map) for a in flat_params]

    out_shape = (
        jax.ShapeDtypeStruct((B, NZ), jnp.float32),      # encoded (logical shape)
        jax.ShapeDtypeStruct((B, D_IN), jnp.float32),    # decoded (logical shape)
    )
    out_specs = (
        pl.BlockSpec((TB, NZ), _batch_map),
        pl.BlockSpec((TB, D_IN), _batch_map),
    )

    encoded, decoded = pl.pallas_call(
        _autoencoder_kernel,
        grid=(num_tiles,),
        in_specs=in_specs,
        out_specs=out_specs,
        out_shape=out_shape,
        compiler_params=pltpu.CompilerParams(
            dimension_semantics=("parallel",)),
    )(x_bf, *flat_params)

    return encoded, decoded


def reference_forward(x, params):
    """Pure-JAX reference with the same bf16-operand / f32-accum math."""
    def lin(h, w, b):
        return jnp.dot(h.astype(jnp.bfloat16), w.astype(jnp.bfloat16),
                       preferred_element_type=jnp.float32) + b

    h = x.astype(jnp.float32)
    for i, (w, b) in enumerate(params[:4]):
        h = lin(h, w, b)
        if i < 3:
            h = jnp.tanh(h)
    encoded = h
    h = encoded
    for i, (w, b) in enumerate(params[4:]):
        h = lin(h, w, b)
        if i < 3:
            h = jnp.tanh(h)
    return encoded, jax.nn.sigmoid(h)


# TODO(synk): lossfunc (nn.BCELoss) is training-time only and not implemented here.

if __name__ == "__main__":
    key = jax.random.PRNGKey(0)
    key, kx = jax.random.split(key)

    params = init_params(key)
    flat_params = prepare_params(params)          # convert / pad once

    # --- small primary test (single grid step) ---
    B = 8
    x = jax.random.uniform(kx, (B, D_IN), jnp.float32)      # pixel-like [0, 1)
    encoded, decoded = autoencoder_forward(x, flat_params)
    jax.block_until_ready((encoded, decoded))

    enc_ref, dec_ref = reference_forward(x, params)
    assert encoded.shape == (B, NZ) and decoded.shape == (B, D_IN)
    assert jnp.allclose(encoded, enc_ref, atol=2e-3, rtol=2e-3), \
        float(jnp.max(jnp.abs(encoded - enc_ref)))
    assert jnp.allclose(decoded, dec_ref, atol=2e-3, rtol=2e-3), \
        float(jnp.max(jnp.abs(decoded - dec_ref)))

    # --- multi-tile grid path (pipelined x/out tiles, VMEM-resident weights) ---
    B2 = 64
    key, kx2 = jax.random.split(key)
    x2 = jax.random.uniform(kx2, (B2, D_IN), jnp.float32)
    enc2, dec2 = autoencoder_forward(x2, flat_params, tile_b=16)   # grid = (4,)
    jax.block_until_ready((enc2, dec2))

    enc2_ref, dec2_ref = reference_forward(x2, params)
    assert jnp.allclose(enc2, enc2_ref, atol=2e-3, rtol=2e-3)
    assert jnp.allclose(dec2, dec2_ref, atol=2e-3, rtol=2e-3)

    print("KERNEL_OK")
</pallas_src>

<mosaic_0001>
module attributes {stable_mosaic.version = 11 : i64} {
  func.func @_autoencoder_kernel(%arg0: i32, %arg1: memref<8x784xbf16, #tpu.memory_space<vmem>>, %arg2: memref<784x128xbf16, #tpu.memory_space<vmem>>, %arg3: memref<1x128xf32, #tpu.memory_space<vmem>>, %arg4: memref<128x64xbf16, #tpu.memory_space<vmem>>, %arg5: memref<1x64xf32, #tpu.memory_space<vmem>>, %arg6: memref<64x128xbf16, #tpu.memory_space<vmem>>, %arg7: memref<1x128xf32, #tpu.memory_space<vmem>>, %arg8: memref<128x128xbf16, #tpu.memory_space<vmem>>, %arg9: memref<1x128xf32, #tpu.memory_space<vmem>>, %arg10: memref<128x128xbf16, #tpu.memory_space<vmem>>, %arg11: memref<1x128xf32, #tpu.memory_space<vmem>>, %arg12: memref<128x64xbf16, #tpu.memory_space<vmem>>, %arg13: memref<1x64xf32, #tpu.memory_space<vmem>>, %arg14: memref<64x128xbf16, #tpu.memory_space<vmem>>, %arg15: memref<1x128xf32, #tpu.memory_space<vmem>>, %arg16: memref<128x784xbf16, #tpu.memory_space<vmem>>, %arg17: memref<1x784xf32, #tpu.memory_space<vmem>>, %arg18: memref<8x2xf32, #tpu.memory_space<vmem>>, %arg19: memref<8x784xf32, #tpu.memory_space<vmem>>) attributes {dimension_semantics = [#tpu.dimension_semantics<parallel>], iteration_bounds = array<i64: 1>, scalar_prefetch = 0 : i64, scratch_operands = 0 : i64, tpu.core_type = #tpu.core_type<tc>, window_params = [{transform_indices = @transform_0, window_bounds = array<i64: 8, 784>}, {pipeline_mode = #tpu.pipeline_mode<synchronous>, transform_indices = @transform_1, window_bounds = array<i64: 784, 128>}, {pipeline_mode = #tpu.pipeline_mode<synchronous>, transform_indices = @transform_2, window_bounds = array<i64: 1, 128>}, {pipeline_mode = #tpu.pipeline_mode<synchronous>, transform_indices = @transform_3, window_bounds = array<i64: 128, 64>}, {pipeline_mode = #tpu.pipeline_mode<synchronous>, transform_indices = @transform_4, window_bounds = array<i64: 1, 64>}, {pipeline_mode = #tpu.pipeline_mode<synchronous>, transform_indices = @transform_5, window_bounds = array<i64: 64, 128>}, {pipeline_mode = #tpu.pipeline_mode<synchronous>, transform_indices = @transform_6, window_bounds = array<i64: 1, 128>}, {pipeline_mode = #tpu.pipeline_mode<synchronous>, transform_indices = @transform_7, window_bounds = array<i64: 128, 128>}, {pipeline_mode = #tpu.pipeline_mode<synchronous>, transform_indices = @transform_8, window_bounds = array<i64: 1, 128>}, {pipeline_mode = #tpu.pipeline_mode<synchronous>, transform_indices = @transform_9, window_bounds = array<i64: 128, 128>}, {pipeline_mode = #tpu.pipeline_mode<synchronous>, transform_indices = @transform_10, window_bounds = array<i64: 1, 128>}, {pipeline_mode = #tpu.pipeline_mode<synchronous>, transform_indices = @transform_11, window_bounds = array<i64: 128, 64>}, {pipeline_mode = #tpu.pipeline_mode<synchronous>, transform_indices = @transform_12, window_bounds = array<i64: 1, 64>}, {pipeline_mode = #tpu.pipeline_mode<synchronous>, transform_indices = @transform_13, window_bounds = array<i64: 64, 128>}, {pipeline_mode = #tpu.pipeline_mode<synchronous>, transform_indices = @transform_14, window_bounds = array<i64: 1, 128>}, {pipeline_mode = #tpu.pipeline_mode<synchronous>, transform_indices = @transform_15, window_bounds = array<i64: 128, 784>}, {pipeline_mode = #tpu.pipeline_mode<synchronous>, transform_indices = @transform_16, window_bounds = array<i64: 1, 784>}, {transform_indices = @transform_17, window_bounds = array<i64: 8, 2>}, {transform_indices = @transform_18, window_bounds = array<i64: 8, 784>}]} {
    %c0 = arith.constant 0 : index
    %c0_0 = arith.constant 0 : index
    %0 = vector.load %arg1[%c0, %c0_0] : memref<8x784xbf16, #tpu.memory_space<vmem>>, vector<8x784xbf16>
    %c0_1 = arith.constant 0 : index
    %c0_2 = arith.constant 0 : index
    %1 = vector.load %arg2[%c0_1, %c0_2] : memref<784x128xbf16, #tpu.memory_space<vmem>>, vector<784x128xbf16>
    %cst = arith.constant dense<0.000000e+00> : vector<8x128xf32>
    %2 = tpu.matmul %0, %1, %cst {dimension_numbers = #tpu.dot_dimension_numbers<[1], [0], [0], [1], [0, 0, 1, 1], [], []>} : vector<8x784xbf16>, vector<784x128xbf16>, vector<8x128xf32> -> vector<8x128xf32>
    %c0_3 = arith.constant 0 : index
    %c0_4 = arith.constant 0 : index
    %3 = vector.load %arg3[%c0_3, %c0_4] : memref<1x128xf32, #tpu.memory_space<vmem>>, vector<1x128xf32>
    %4 = vector.broadcast %3 : vector<1x128xf32> to vector<8x128xf32>
    %5 = arith.addf %2, %4 : vector<8x128xf32>
    %6 = math.tanh %5 : vector<8x128xf32>
    %7 = arith.truncf %6 : vector<8x128xf32> to vector<8x128xbf16>
    %c0_5 = arith.constant 0 : index
    %c0_6 = arith.constant 0 : index
    %8 = vector.load %arg4[%c0_5, %c0_6] : memref<128x64xbf16, #tpu.memory_space<vmem>>, vector<128x64xbf16>
    %cst_7 = arith.constant dense<0.000000e+00> : vector<8x64xf32>
    %9 = tpu.matmul %7, %8, %cst_7 {dimension_numbers = #tpu.dot_dimension_numbers<[1], [0], [0], [1], [0, 0, 1, 1], [], []>} : vector<8x128xbf16>, vector<128x64xbf16>, vector<8x64xf32> -> vector<8x64xf32>
    %c0_8 = arith.constant 0 : index
    %c0_9 = arith.constant 0 : index
    %10 = vector.load %arg5[%c0_8, %c0_9] : memref<1x64xf32, #tpu.memory_space<vmem>>, vector<1x64xf32>
    %11 = vector.broadcast %10 : vector<1x64xf32> to vector<8x64xf32>
    %12 = arith.addf %9, %11 : vector<8x64xf32>
    %13 = math.tanh %12 : vector<8x64xf32>
    %14 = arith.truncf %13 : vector<8x64xf32> to vector<8x64xbf16>
    %c0_10 = arith.constant 0 : index
    %c0_11 = arith.constant 0 : index
    %15 = vector.load %arg6[%c0_10, %c0_11] : memref<64x128xbf16, #tpu.memory_space<vmem>>, vector<64x128xbf16>
    %cst_12 = arith.constant dense<0.000000e+00> : vector<8x128xf32>
    %16 = tpu.matmul %14, %15, %cst_12 {dimension_numbers = #tpu.dot_dimension_numbers<[1], [0], [0], [1], [0, 0, 1, 1], [], []>} : vector<8x64xbf16>, vector<64x128xbf16>, vector<8x128xf32> -> vector<8x128xf32>
    %c0_13 = arith.constant 0 : index
    %c0_14 = arith.constant 0 : index
    %17 = vector.load %arg7[%c0_13, %c0_14] : memref<1x128xf32, #tpu.memory_space<vmem>>, vector<1x128xf32>
    %18 = vector.broadcast %17 : vector<1x128xf32> to vector<8x128xf32>
    %19 = arith.addf %16, %18 : vector<8x128xf32>
    %20 = math.tanh %19 : vector<8x128xf32>
    %21 = arith.truncf %20 : vector<8x128xf32> to vector<8x128xbf16>
    %c0_15 = arith.constant 0 : index
    %c0_16 = arith.constant 0 : index
    %22 = vector.load %arg8[%c0_15, %c0_16] : memref<128x128xbf16, #tpu.memory_space<vmem>>, vector<128x128xbf16>
    %cst_17 = arith.constant dense<0.000000e+00> : vector<8x128xf32>
    %23 = tpu.matmul %21, %22, %cst_17 {dimension_numbers = #tpu.dot_dimension_numbers<[1], [0], [0], [1], [0, 0, 1, 1], [], []>} : vector<8x128xbf16>, vector<128x128xbf16>, vector<8x128xf32> -> vector<8x128xf32>
    %c0_18 = arith.constant 0 : index
    %c0_19 = arith.constant 0 : index
    %24 = vector.load %arg9[%c0_18, %c0_19] : memref<1x128xf32, #tpu.memory_space<vmem>>, vector<1x128xf32>
    %25 = vector.broadcast %24 : vector<1x128xf32> to vector<8x128xf32>
    %26 = arith.addf %23, %25 : vector<8x128xf32>
    %27 = vector.extract_strided_slice %26 {offsets = [0, 0], sizes = [8, 2], strides = [1, 1]} : vector<8x128xf32> to vector<8x2xf32>
    %c0_20 = arith.constant 0 : index
    %c0_21 = arith.constant 0 : index
    %28 = vector.load %arg18[%c0_20, %c0_21] : memref<8x2xf32, #tpu.memory_space<vmem>>, vector<8x2xf32>
    tpu.vector_store %arg18[%c0_20, %c0_21], %27 {strides = array<i32>} : memref<8x2xf32, #tpu.memory_space<vmem>>, vector<8x2xf32>,
    %29 = arith.truncf %26 : vector<8x128xf32> to vector<8x128xbf16>
    %c0_22 = arith.constant 0 : index
    %c0_23 = arith.constant 0 : index
    %30 = vector.load %arg10[%c0_22, %c0_23] : memref<128x128xbf16, #tpu.memory_space<vmem>>, vector<128x128xbf16>
    %cst_24 = arith.constant dense<0.000000e+00> : vector<8x128xf32>
    %31 = tpu.matmul %29, %30, %cst_24 {dimension_numbers = #tpu.dot_dimension_numbers<[1], [0], [0], [1], [0, 0, 1, 1], [], []>} : vector<8x128xbf16>, vector<128x128xbf16>, vector<8x128xf32> -> vector<8x128xf32>
    %c0_25 = arith.constant 0 : index
    %c0_26 = arith.constant 0 : index
    %32 = vector.load %arg11[%c0_25, %c0_26] : memref<1x128xf32, #tpu.memory_space<vmem>>, vector<1x128xf32>
    %33 = vector.broadcast %32 : vector<1x128xf32> to vector<8x128xf32>
    %34 = arith.addf %31, %33 : vector<8x128xf32>
    %35 = math.tanh %34 : vector<8x128xf32>
    %36 = arith.truncf %35 : vector<8x128xf32> to vector<8x128xbf16>
    %c0_27 = arith.constant 0 : index
    %c0_28 = arith.constant 0 : index
    %37 = vector.load %arg12[%c0_27, %c0_28] : memref<128x64xbf16, #tpu.memory_space<vmem>>, vector<128x64xbf16>
    %cst_29 = arith.constant dense<0.000000e+00> : vector<8x64xf32>
    %38 = tpu.matmul %36, %37, %cst_29 {dimension_numbers = #tpu.dot_dimension_numbers<[1], [0], [0], [1], [0, 0, 1, 1], [], []>} : vector<8x128xbf16>, vector<128x64xbf16>, vector<8x64xf32> -> vector<8x64xf32>
    %c0_30 = arith.constant 0 : index
    %c0_31 = arith.constant 0 : index
    %39 = vector.load %arg13[%c0_30, %c0_31] : memref<1x64xf32, #tpu.memory_space<vmem>>, vector<1x64xf32>
    %40 = vector.broadcast %39 : vector<1x64xf32> to vector<8x64xf32>
    %41 = arith.addf %38, %40 : vector<8x64xf32>
    %42 = math.tanh %41 : vector<8x64xf32>
    %43 = arith.truncf %42 : vector<8x64xf32> to vector<8x64xbf16>
    %c0_32 = arith.constant 0 : index
    %c0_33 = arith.constant 0 : index
    %44 = vector.load %arg14[%c0_32, %c0_33] : memref<64x128xbf16, #tpu.memory_space<vmem>>, vector<64x128xbf16>
    %cst_34 = arith.constant dense<0.000000e+00> : vector<8x128xf32>
    %45 = tpu.matmul %43, %44, %cst_34 {dimension_numbers = #tpu.dot_dimension_numbers<[1], [0], [0], [1], [0, 0, 1, 1], [], []>} : vector<8x64xbf16>, vector<64x128xbf16>, vector<8x128xf32> -> vector<8x128xf32>
    %c0_35 = arith.constant 0 : index
    %c0_36 = arith.constant 0 : index
    %46 = vector.load %arg15[%c0_35, %c0_36] : memref<1x128xf32, #tpu.memory_space<vmem>>, vector<1x128xf32>
    %47 = vector.broadcast %46 : vector<1x128xf32> to vector<8x128xf32>
    %48 = arith.addf %45, %47 : vector<8x128xf32>
    %49 = math.tanh %48 : vector<8x128xf32>
    %50 = arith.truncf %49 : vector<8x128xf32> to vector<8x128xbf16>
    %c0_37 = arith.constant 0 : index
    %c0_38 = arith.constant 0 : index
    %51 = vector.load %arg16[%c0_37, %c0_38] : memref<128x784xbf16, #tpu.memory_space<vmem>>, vector<128x784xbf16>
    %cst_39 = arith.constant dense<0.000000e+00> : vector<8x784xf32>
    %52 = tpu.matmul %50, %51, %cst_39 {dimension_numbers = #tpu.dot_dimension_numbers<[1], [0], [0], [1], [0, 0, 1, 1], [], []>} : vector<8x128xbf16>, vector<128x784xbf16>, vector<8x784xf32> -> vector<8x784xf32>
    %c0_40 = arith.constant 0 : index
    %c0_41 = arith.constant 0 : index
    %53 = vector.load %arg17[%c0_40, %c0_41] : memref<1x784xf32, #tpu.memory_space<vmem>>, vector<1x784xf32>
    %54 = vector.broadcast %53 : vector<1x784xf32> to vector<8x784xf32>
    %55 = arith.addf %52, %54 : vector<8x784xf32>
    %56 = arith.negf %55 : vector<8x784xf32>
    %57 = math.exp %56 : vector<8x784xf32>
    %cst_42 = arith.constant 1.000000e+00 : f32
    %58 = vector.broadcast %cst_42 : f32 to vector<8x784xf32>
    %59 = arith.addf %58, %57 : vector<8x784xf32>
    %60 = arith.divf %58, %59 : vector<8x784xf32>
    %c0_43 = arith.constant 0 : index
    %c0_44 = arith.constant 0 : index
    %61 = vector.load %arg19[%c0_43, %c0_44] : memref<8x784xf32, #tpu.memory_space<vmem>>, vector<8x784xf32>
    tpu.vector_store %arg19[%c0_43, %c0_44], %60 {strides = array<i32>} : memref<8x784xf32, #tpu.memory_space<vmem>>, vector<8x784xf32>,
    return
  }
  func.func @transform_0(%arg0: i32) -> (i32, i32) {
    %c0_i32 = arith.constant 0 : i32
    %c0_i32_0 = arith.constant 0 : i32
    return %arg0, %c0_i32 : i32, i32
  }
  func.func @transform_1(%arg0: i32) -> (i32, i32) {
    %c0_i32 = arith.constant 0 : i32
    %c0_i32_0 = arith.constant 0 : i32
    %c0_i32_1 = arith.constant 0 : i32
    return %c0_i32, %c0_i32_0 : i32, i32
  }
  func.func @transform_2(%arg0: i32) -> (i32, i32) {
    %c0_i32 = arith.constant 0 : i32
    %c0_i32_0 = arith.constant 0 : i32
    %c0_i32_1 = arith.constant 0 : i32
    return %c0_i32, %c0_i32_0 : i32, i32
  }
  func.func @transform_3(%arg0: i32) -> (i32, i32) {
    %c0_i32 = arith.constant 0 : i32
    %c0_i32_0 = arith.constant 0 : i32
    %c0_i32_1 = arith.constant 0 : i32
    return %c0_i32, %c0_i32_0 : i32, i32
  }
  func.func @transform_4(%arg0: i32) -> (i32, i32) {
    %c0_i32 = arith.constant 0 : i32
    %c0_i32_0 = arith.constant 0 : i32
    %c0_i32_1 = arith.constant 0 : i32
    return %c0_i32, %c0_i32_0 : i32, i32
  }
  func.func @transform_5(%arg0: i32) -> (i32, i32) {
    %c0_i32 = arith.constant 0 : i32
    %c0_i32_0 = arith.constant 0 : i32
    %c0_i32_1 = arith.constant 0 : i32
    return %c0_i32, %c0_i32_0 : i32, i32
  }
  func.func @transform_6(%arg0: i32) -> (i32, i32) {
    %c0_i32 = arith.constant 0 : i32
    %c0_i32_0 = arith.constant 0 : i32
    %c0_i32_1 = arith.constant 0 : i32
    return %c0_i32, %c0_i32_0 : i32, i32
  }
  func.func @transform_7(%arg0: i32) -> (i32, i32) {
    %c0_i32 = arith.constant 0 : i32
    %c0_i32_0 = arith.constant 0 : i32
    %c0_i32_1 = arith.constant 0 : i32
    return %c0_i32, %c0_i32_0 : i32, i32
  }
  func.func @transform_8(%arg0: i32) -> (i32, i32) {
    %c0_i32 = arith.constant 0 : i32
    %c0_i32_0 = arith.constant 0 : i32
    %c0_i32_1 = arith.constant 0 : i32
    return %c0_i32, %c0_i32_0 : i32, i32
  }
  func.func @transform_9(%arg0: i32) -> (i32, i32) {
    %c0_i32 = arith.constant 0 : i32
    %c0_i32_0 = arith.constant 0 : i32
    %c0_i32_1 = arith.constant 0 : i32
    return %c0_i32, %c0_i32_0 : i32, i32
  }
  func.func @transform_10(%arg0: i32) -> (i32, i32) {
    %c0_i32 = arith.constant 0 : i32
    %c0_i32_0 = arith.constant 0 : i32
    %c0_i32_1 = arith.constant 0 : i32
    return %c0_i32, %c0_i32_0 : i32, i32
  }
  func.func @transform_11(%arg0: i32) -> (i32, i32) {
    %c0_i32 = arith.constant 0 : i32
    %c0_i32_0 = arith.constant 0 : i32
    %c0_i32_1 = arith.constant 0 : i32
    return %c0_i32, %c0_i32_0 : i32, i32
  }
  func.func @transform_12(%arg0: i32) -> (i32, i32) {
    %c0_i32 = arith.constant 0 : i32
    %c0_i32_0 = arith.constant 0 : i32
    %c0_i32_1 = arith.constant 0 : i32
    return %c0_i32, %c0_i32_0 : i32, i32
  }
  func.func @transform_13(%arg0: i32) -> (i32, i32) {
    %c0_i32 = arith.constant 0 : i32
    %c0_i32_0 = arith.constant 0 : i32
    %c0_i32_1 = arith.constant 0 : i32
    return %c0_i32, %c0_i32_0 : i32, i32
  }
  func.func @transform_14(%arg0: i32) -> (i32, i32) {
    %c0_i32 = arith.constant 0 : i32
    %c0_i32_0 = arith.constant 0 : i32
    %c0_i32_1 = arith.constant 0 : i32
    return %c0_i32, %c0_i32_0 : i32, i32
  }
  func.func @transform_15(%arg0: i32) -> (i32, i32) {
    %c0_i32 = arith.constant 0 : i32
    %c0_i32_0 = arith.constant 0 : i32
    %c0_i32_1 = arith.constant 0 : i32
    return %c0_i32, %c0_i32_0 : i32, i32
  }
  func.func @transform_16(%arg0: i32) -> (i32, i32) {
    %c0_i32 = arith.constant 0 : i32
    %c0_i32_0 = arith.constant 0 : i32
    %c0_i32_1 = arith.constant 0 : i32
    return %c0_i32, %c0_i32_0 : i32, i32
  }
  func.func @transform_17(%arg0: i32) -> (i32, i32) {
    %c0_i32 = arith.constant 0 : i32
    %c0_i32_0 = arith.constant 0 : i32
    return %arg0, %c0_i32 : i32, i32
  }
  func.func @transform_18(%arg0: i32) -> (i32, i32) {
    %c0_i32 = arith.constant 0 : i32
    %c0_i32_0 = arith.constant 0 : i32
    return %arg0, %c0_i32 : i32, i32
  }
}

</mosaic_0001>

<llo_original>
// kernel: autoencoder_forward.1
$region0: #{autoencoder_forward.1}
  #allocation0 [shape = 'u32[]', space=smem, size = 0x4, offset = 0x4, fixed_abs, tag = 'smem constant byte address 0x4 - core index']
  #allocation1 [shape = 'u32[144,128]{1,0:T(1,128)}', space=vmem, size = 0x12000, scoped, tag = 'internal scratch']
  %s0 = inlined_call_operand.vmem [shape: bf16[8,784], index: 0, kind: input, shape index: {}]
  %s1 = inlined_call_operand.vmem [shape: bf16[784,128], index: 1, kind: input, shape index: {}]
  %s2 = inlined_call_operand.vmem [shape: f32[1,128], index: 2, kind: input, shape index: {}]
  %s3 = inlined_call_operand.vmem [shape: bf16[128,64], index: 3, kind: input, shape index: {}]
  %s4 = inlined_call_operand.vmem [shape: f32[1,64], index: 4, kind: input, shape index: {}]
  %s5 = inlined_call_operand.vmem [shape: bf16[64,128], index: 5, kind: input, shape index: {}]
  %s6 = inlined_call_operand.vmem [shape: f32[1,128], index: 6, kind: input, shape index: {}]
  %s7 = inlined_call_operand.vmem [shape: bf16[128,128], index: 7, kind: input, shape index: {}]
  %s8 = inlined_call_operand.vmem [shape: f32[1,128], index: 8, kind: input, shape index: {}]
  %s9 = inlined_call_operand.vmem [shape: bf16[128,128], index: 9, kind: input, shape index: {}]
  %s10 = inlined_call_operand.vmem [shape: f32[1,128], index: 10, kind: input, shape index: {}]
  %s11 = inlined_call_operand.vmem [shape: bf16[128,64], index: 11, kind: input, shape index: {}]
  %s12 = inlined_call_operand.vmem [shape: f32[1,64], index: 12, kind: input, shape index: {}]
  %s13 = inlined_call_operand.vmem [shape: bf16[64,128], index: 13, kind: input, shape index: {}]
  %s14 = inlined_call_operand.vmem [shape: f32[1,128], index: 14, kind: input, shape index: {}]
  %s15 = inlined_call_operand.vmem [shape: bf16[128,784], index: 15, kind: input, shape index: {}]
  %s16 = inlined_call_operand.vmem [shape: f32[1,784], index: 16, kind: input, shape index: {}]
  %s17 = inlined_call_operand.vmem [shape: f32[8,2], index: 17, kind: output, shape index: {0}]
  %s18 = inlined_call_operand.hbm [shape: f32[8,784], index: 18, kind: output, shape index: {1}]
  %19 = xla_tuple %s17, %s18
  %s20 = sld [smem:[#allocation0]]
  $region86: #{autoencoder_forward.1} parent=0
    _
  %s22 = ssub.s32 1, %s20
  %s23 = scalar_select 0, %s22, %s20
  $region1: #{autoencoder_forward.1} parent=0
    #allocation2 [shape = 'u8[28672]{0}', space=vmem, size = 0x7000, scoped, tag = 'output window, operand 1, single buffered']
    #allocation3 [shape = 's32[1]{0}', space=sflag, size = 0x4, scoped, tag = 'scoped memory for autoencoder_forward.1']
    %24 = vsyncpa [#allocation3], 0
    // Predicated region
    $region2: #{autoencoder_forward.1} parent=1 // pred_check
      _
    $region3: #{autoencoder_forward.1} parent=1 // pred_check_branch
      %26 = sbr.rel (0) target = $region5
    $region4: #{autoencoder_forward.1} parent=1 // pred_region
      _
    $region5: #{autoencoder_forward.1} parent=1 // pred_fallthru
      _
    // Predicated region
    $region6: #{autoencoder_forward.1} parent=1 // pred_check
      _
    $region7: #{autoencoder_forward.1} parent=1 // pred_check_branch
      %28 = sbr.rel (0) target = $region9
    $region8: #{autoencoder_forward.1} parent=1 // pred_region
      _
    $region9: #{autoencoder_forward.1} parent=1 // pred_fallthru
      _
    // Predicated region
    $region10: #{autoencoder_forward.1} parent=1 // pred_check
      _
    $region11: #{autoencoder_forward.1} parent=1 // pred_check_branch
      %30 = sbr.rel (0) target = $region13
    $region12: #{autoencoder_forward.1} parent=1 // pred_region
      _
    $region13: #{autoencoder_forward.1} parent=1 // pred_fallthru
      _
    // Predicated region
    $region14: #{autoencoder_forward.1} parent=1 // pred_check
      _
    $region15: #{autoencoder_forward.1} parent=1 // pred_check_branch
      %32 = sbr.rel (0) target = $region17
    $region16: #{autoencoder_forward.1} parent=1 // pred_region
      _
    $region17: #{autoencoder_forward.1} parent=1 // pred_fallthru
      _
    // Predicated region
    $region18: #{autoencoder_forward.1} parent=1 // pred_check
      _
    $region19: #{autoencoder_forward.1} parent=1 // pred_check_branch
      %34 = sbr.rel (0) target = $region21
    $region20: #{autoencoder_forward.1} parent=1 // pred_region
      _
    $region21: #{autoencoder_forward.1} parent=1 // pred_fallthru
      _
    // Predicated region
    $region22: #{autoencoder_forward.1} parent=1 // pred_check
      _
    $region23: #{autoencoder_forward.1} parent=1 // pred_check_branch
      %36 = sbr.rel (0) target = $region25
    $region24: #{autoencoder_forward.1} parent=1 // pred_region
      _
    $region25: #{autoencoder_forward.1} parent=1 // pred_fallthru
      _
    // Predicated region
    $region26: #{autoencoder_forward.1} parent=1 // pred_check
      _
    $region27: #{autoencoder_forward.1} parent=1 // pred_check_branch
      %38 = sbr.rel (0) target = $region29
    $region28: #{autoencoder_forward.1} parent=1 // pred_region
      _
    $region29: #{autoencoder_forward.1} parent=1 // pred_fallthru
      _
    // Predicated region
    $region30: #{autoencoder_forward.1} parent=1 // pred_check
      _
    $region31: #{autoencoder_forward.1} parent=1 // pred_check_branch
      %40 = sbr.rel (0) target = $region33
    $region32: #{autoencoder_forward.1} parent=1 // pred_region
      _
    $region33: #{autoencoder_forward.1} parent=1 // pred_fallthru
      _
    // Predicated region
    $region34: #{autoencoder_forward.1} parent=1 // pred_check
      _
    $region35: #{autoencoder_forward.1} parent=1 // pred_check_branch
      %42 = sbr.rel (0) target = $region37
    $region36: #{autoencoder_forward.1} parent=1 // pred_region
      _
    $region37: #{autoencoder_forward.1} parent=1 // pred_fallthru
      _
    // Predicated region
    $region38: #{autoencoder_forward.1} parent=1 // pred_check
      _
    $region39: #{autoencoder_forward.1} parent=1 // pred_check_branch
      %44 = sbr.rel (0) target = $region41
    $region40: #{autoencoder_forward.1} parent=1 // pred_region
      _
    $region41: #{autoencoder_forward.1} parent=1 // pred_fallthru
      _
    // Predicated region
    $region42: #{autoencoder_forward.1} parent=1 // pred_check
      _
    $region43: #{autoencoder_forward.1} parent=1 // pred_check_branch
      %46 = sbr.rel (0) target = $region45
    $region44: #{autoencoder_forward.1} parent=1 // pred_region
      _
    $region45: #{autoencoder_forward.1} parent=1 // pred_fallthru
      _
    // Predicated region
    $region46: #{autoencoder_forward.1} parent=1 // pred_check
      _
    $region47: #{autoencoder_forward.1} parent=1 // pred_check_branch
      %48 = sbr.rel (0) target = $region49
    $region48: #{autoencoder_forward.1} parent=1 // pred_region
      _
    $region49: #{autoencoder_forward.1} parent=1 // pred_fallthru
      _
    // Predicated region
    $region50: #{autoencoder_forward.1} parent=1 // pred_check
      _
    $region51: #{autoencoder_forward.1} parent=1 // pred_check_branch
      %50 = sbr.rel (0) target = $region53
    $region52: #{autoencoder_forward.1} parent=1 // pred_region
      _
    $region53: #{autoencoder_forward.1} parent=1 // pred_fallthru
      _
    // Predicated region
    $region54: #{autoencoder_forward.1} parent=1 // pred_check
      _
    $region55: #{autoencoder_forward.1} parent=1 // pred_check_branch
      %52 = sbr.rel (0) target = $region57
    $region56: #{autoencoder_forward.1} parent=1 // pred_region
      _
    $region57: #{autoencoder_forward.1} parent=1 // pred_fallthru
      _
    // Predicated region
    $region58: #{autoencoder_forward.1} parent=1 // pred_check
      _
    $region59: #{autoencoder_forward.1} parent=1 // pred_check_branch
      %54 = sbr.rel (0) target = $region61
    $region60: #{autoencoder_forward.1} parent=1 // pred_region
      _
    $region61: #{autoencoder_forward.1} parent=1 // pred_fallthru
      _
    // Predicated region
    $region62: #{autoencoder_forward.1} parent=1 // pred_check
      _
    $region63: #{autoencoder_forward.1} parent=1 // pred_check_branch
      %56 = sbr.rel (0) target = $region65
    $region64: #{autoencoder_forward.1} parent=1 // pred_region
      _
    $region65: #{autoencoder_forward.1} parent=1 // pred_fallthru
      _
    // Predicated region
    $region66: #{autoencoder_forward.1} parent=1 // pred_check
      _
    $region67: #{autoencoder_forward.1} parent=1 // pred_check_branch
      %58 = sbr.rel (0) target = $region69
    $region68: #{autoencoder_forward.1} parent=1 // pred_region
      _
    $region69: #{autoencoder_forward.1} parent=1 // pred_fallthru
      _
    %v60 = vld [vmem:[%s0] sm:$0xff]
    %v61 = vld [vmem:[%s0 + $0x8] sm:$0xff]
    %v62 = vld [vmem:[%s0 + $0x10] sm:$0xff]
    %v63 = vld [vmem:[%s0 + $0x18] sm:$0xf]
    %v64 = vld [vmem:[%s1] sm:$0xf]
    %v65 = vld [vmem:[%s1 + $0x4] sm:$0xf]
    %v66 = vld [vmem:[%s1 + $0x8] sm:$0xf]
    %v67 = vld [vmem:[%s1 + $0xc] sm:$0xf]
    %v68 = vld [vmem:[%s1 + $0x10] sm:$0xf]
    %v69 = vld [vmem:[%s1 + $0x14] sm:$0xf]
    %v70 = vld [vmem:[%s1 + $0x18] sm:$0xf]
    %v71 = vld [vmem:[%s1 + $0x1c] sm:$0xf]
    %v72 = vld [vmem:[%s1 + $0x20] sm:$0xf]
    %v73 = vld [vmem:[%s1 + $0x24] sm:$0xf]
    %v74 = vld [vmem:[%s1 + $0x28] sm:$0xf]
    %v75 = vld [vmem:[%s1 + $0x2c] sm:$0xf]
    %v76 = vld [vmem:[%s1 + $0x30] sm:$0xf]
    %v77 = vld [vmem:[%s1 + $0x34] sm:$0xf]
    %v78 = vld [vmem:[%s1 + $0x38] sm:$0xf]
    %v79 = vld [vmem:[%s1 + $0x3c] sm:$0xf]
    %v80 = vld [vmem:[%s1 + $0x40] sm:$0xf]
    %v81 = vld [vmem:[%s1 + $0x44] sm:$0xf]
    %v82 = vld [vmem:[%s1 + $0x48] sm:$0xf]
    %v83 = vld [vmem:[%s1 + $0x4c] sm:$0xf]
    %v84 = vld [vmem:[%s1 + $0x50] sm:$0xf]
    %v85 = vld [vmem:[%s1 + $0x54] sm:$0xf]
    %v86 = vld [vmem:[%s1 + $0x58] sm:$0xf]
    %v87 = vld [vmem:[%s1 + $0x5c] sm:$0xf]
    %v88 = vld [vmem:[%s1 + $0x60] sm:$0xf]
    %v89 = vld [vmem:[%s1 + $0x64] sm:$0xf]
    %v90 = vld [vmem:[%s1 + $0x68] sm:$0xf]
    %v91 = vld [vmem:[%s1 + $0x6c] sm:$0xf]
    %v92 = vld [vmem:[%s1 + $0x70] sm:$0xf]
    %v93 = vld [vmem:[%s1 + $0x74] sm:$0xf]
    %v94 = vld [vmem:[%s1 + $0x78] sm:$0xf]
    %v95 = vld [vmem:[%s1 + $0x7c] sm:$0xf]
    %v96 = vld [vmem:[%s1 + $0x80] sm:$0xf]
    %v97 = vld [vmem:[%s1 + $0x84] sm:$0xf]
    %v98 = vld [vmem:[%s1 + $0x88] sm:$0xf]
    %v99 = vld [vmem:[%s1 + $0x8c] sm:$0xf]
    %v100 = vld [vmem:[%s1 + $0x90] sm:$0xf]
    %v101 = vld [vmem:[%s1 + $0x94] sm:$0xf]
    %v102 = vld [vmem:[%s1 + $0x98] sm:$0xf]
    %v103 = vld [vmem:[%s1 + $0x9c] sm:$0xf]
    %v104 = vld [vmem:[%s1 + $0xa0] sm:$0xf]
    %v105 = vld [vmem:[%s1 + $0xa4] sm:$0xf]
    %v106 = vld [vmem:[%s1 + $0xa8] sm:$0xf]
    %v107 = vld [vmem:[%s1 + $0xac] sm:$0xf]
    %v108 = vld [vmem:[%s1 + $0xb0] sm:$0xf]
    %v109 = vld [vmem:[%s1 + $0xb4] sm:$0xf]
    %v110 = vld [vmem:[%s1 + $0xb8] sm:$0xf]
    %v111 = vld [vmem:[%s1 + $0xbc] sm:$0xf]
    %v112 = vld [vmem:[%s1 + $0xc0] sm:$0xf]
    %v113 = vld [vmem:[%s1 + $0xc4] sm:$0xf]
    %v114 = vld [vmem:[%s1 + $0xc8] sm:$0xf]
    %v115 = vld [vmem:[%s1 + $0xcc] sm:$0xf]
    %v116 = vld [vmem:[%s1 + $0xd0] sm:$0xf]
    %v117 = vld [vmem:[%s1 + $0xd4] sm:$0xf]
    %v118 = vld [vmem:[%s1 + $0xd8] sm:$0xf]
    %v119 = vld [vmem:[%s1 + $0xdc] sm:$0xf]
    %v120 = vld [vmem:[%s1 + $0xe0] sm:$0xf]
    %v121 = vld [vmem:[%s1 + $0xe4] sm:$0xf]
    %v122 = vld [vmem:[%s1 + $0xe8] sm:$0xf]
    %v123 = vld [vmem:[%s1 + $0xec] sm:$0xf]
    %v124 = vld [vmem:[%s1 + $0xf0] sm:$0xf]
    %v125 = vld [vmem:[%s1 + $0xf4] sm:$0xf]
    %v126 = vld [vmem:[%s1 + $0xf8] sm:$0xf]
    %v127 = vld [vmem:[%s1 + $0xfc] sm:$0xf]
    %v128 = vld [vmem:[%s1 + $0x100] sm:$0xf]
    %v129 = vld [vmem:[%s1 + $0x104] sm:$0xf]
    %v130 = vld [vmem:[%s1 + $0x108] sm:$0xf]
    %v131 = vld [vmem:[%s1 + $0x10c] sm:$0xf]
    %v132 = vld [vmem:[%s1 + $0x110] sm:$0xf]
    %v133 = vld [vmem:[%s1 + $0x114] sm:$0xf]
    %v134 = vld [vmem:[%s1 + $0x118] sm:$0xf]
    %v135 = vld [vmem:[%s1 + $0x11c] sm:$0xf]
    %v136 = vld [vmem:[%s1 + $0x120] sm:$0xf]
    %v137 = vld [vmem:[%s1 + $0x124] sm:$0xf]
    %v138 = vld [vmem:[%s1 + $0x128] sm:$0xf]
    %v139 = vld [vmem:[%s1 + $0x12c] sm:$0xf]
    %v140 = vld [vmem:[%s1 + $0x130] sm:$0xf]
    %v141 = vld [vmem:[%s1 + $0x134] sm:$0xf]
    %v142 = vld [vmem:[%s1 + $0x138] sm:$0xf]
    %v143 = vld [vmem:[%s1 + $0x13c] sm:$0xf]
    %v144 = vld [vmem:[%s1 + $0x140] sm:$0xf]
    %v145 = vld [vmem:[%s1 + $0x144] sm:$0xf]
    %v146 = vld [vmem:[%s1 + $0x148] sm:$0xf]
    %v147 = vld [vmem:[%s1 + $0x14c] sm:$0xf]
    %v148 = vld [vmem:[%s1 + $0x150] sm:$0xf]
    %v149 = vld [vmem:[%s1 + $0x154] sm:$0xf]
    %v150 = vld [vmem:[%s1 + $0x158] sm:$0xf]
    %v151 = vld [vmem:[%s1 + $0x15c] sm:$0xf]
    %v152 = vld [vmem:[%s1 + $0x160] sm:$0xf]
    %v153 = vld [vmem:[%s1 + $0x164] sm:$0xf]
    %v154 = vld [vmem:[%s1 + $0x168] sm:$0xf]
    %v155 = vld [vmem:[%s1 + $0x16c] sm:$0xf]
    %v156 = vld [vmem:[%s1 + $0x170] sm:$0xf]
    %v157 = vld [vmem:[%s1 + $0x174] sm:$0xf]
    %v158 = vld [vmem:[%s1 + $0x178] sm:$0xf]
    %v159 = vld [vmem:[%s1 + $0x17c] sm:$0xf]
    %v160 = vld [vmem:[%s1 + $0x180] sm:$0xf]
    %v161 = vld [vmem:[%s1 + $0x184] sm:$0xf]
    %v162 = vld [vmem:[%s2] sm:$0x1]
    %v164 = vlaneseq
    %v165 = vshrl.u32 %v164, 7
    %v166 = vsub.s32 0, %v165
    %v167 = vrot.slane %v162, %v166
    %v173 = vunpack.c.l.b16 %v60
    %v174 = vunpack.c.h.b16 %v60
    %v175 = vunpack.c.l.b16 %v61
    %v176 = vunpack.c.h.b16 %v61
    %v177 = vunpack.c.l.b16 %v62
    %v178 = vunpack.c.h.b16 %v62
    %v179 = vunpack.c.l.b16 %v63
    %v180 = vpack.c.b16 %v173, %v173
    %v181 = vpack.c.b16 %v174, %v174
    %v182 = vpack.c.b16 %v175, %v175
    %v183 = vpack.c.b16 %v176, %v176
    %v184 = vpack.c.b16 %v177, %v177
    %v185 = vpack.c.b16 %v178, %v178
    %v186 = vpack.c.b16 %v179, %v179
    %v291 = vunpack.c.l.b16 %v64
    %v292 = vunpack.c.l.b16 %v65
    %v293 = vunpack.c.l.b16 %v66
    %v294 = vunpack.c.l.b16 %v67
    %v295 = vunpack.c.l.b16 %v68
    %v296 = vunpack.c.l.b16 %v69
    %v297 = vunpack.c.l.b16 %v70
    %v298 = vunpack.c.l.b16 %v71
    %v299 = vunpack.c.l.b16 %v72
    %v300 = vunpack.c.l.b16 %v73
    %v301 = vunpack.c.l.b16 %v74
    %v302 = vunpack.c.l.b16 %v75
    %v303 = vunpack.c.l.b16 %v76
    %v304 = vunpack.c.l.b16 %v77
    %v305 = vunpack.c.l.b16 %v78
    %v306 = vunpack.c.l.b16 %v79
    %v307 = vunpack.c.l.b16 %v80
    %v308 = vunpack.c.l.b16 %v81
    %v309 = vunpack.c.l.b16 %v82
    %v310 = vunpack.c.l.b16 %v83
    %v311 = vunpack.c.l.b16 %v84
    %v312 = vunpack.c.l.b16 %v85
    %v313 = vunpack.c.l.b16 %v86
    %v314 = vunpack.c.l.b16 %v87
    %v315 = vunpack.c.l.b16 %v88
    %v316 = vunpack.c.l.b16 %v89
    %v317 = vunpack.c.l.b16 %v90
    %v318 = vunpack.c.l.b16 %v91
    %v319 = vunpack.c.l.b16 %v92
    %v320 = vunpack.c.l.b16 %v93
    %v321 = vunpack.c.l.b16 %v94
    %v322 = vunpack.c.l.b16 %v95
    %v323 = vunpack.c.l.b16 %v96
    %v324 = vunpack.c.l.b16 %v97
    %v325 = vunpack.c.l.b16 %v98
    %v326 = vunpack.c.l.b16 %v99
    %v327 = vunpack.c.l.b16 %v100
    %v328 = vunpack.c.l.b16 %v101
    %v329 = vunpack.c.l.b16 %v102
    %v330 = vunpack.c.l.b16 %v103
    %v331 = vunpack.c.l.b16 %v104
    %v332 = vunpack.c.l.b16 %v105
    %v333 = vunpack.c.l.b16 %v106
    %v334 = vunpack.c.l.b16 %v107
    %v335 = vunpack.c.l.b16 %v108
    %v336 = vunpack.c.l.b16 %v109
    %v337 = vunpack.c.l.b16 %v110
    %v338 = vunpack.c.l.b16 %v111
    %v339 = vunpack.c.l.b16 %v112
    %v340 = vunpack.c.l.b16 %v113
    %v341 = vunpack.c.l.b16 %v114
    %v342 = vunpack.c.l.b16 %v115
    %v343 = vunpack.c.l.b16 %v116
    %v344 = vunpack.c.l.b16 %v117
    %v345 = vunpack.c.l.b16 %v118
    %v346 = vunpack.c.l.b16 %v119
    %v347 = vunpack.c.l.b16 %v120
    %v348 = vunpack.c.l.b16 %v121
    %v349 = vunpack.c.l.b16 %v122
    %v350 = vunpack.c.l.b16 %v123
    %v351 = vunpack.c.l.b16 %v124
    %v352 = vunpack.c.l.b16 %v125
    %v353 = vunpack.c.l.b16 %v126
    %v354 = vunpack.c.l.b16 %v127
    %v355 = vunpack.c.l.b16 %v128
    %v356 = vunpack.c.l.b16 %v129
    %v357 = vunpack.c.l.b16 %v130
    %v358 = vunpack.c.l.b16 %v131
    %v359 = vunpack.c.l.b16 %v132
    %v360 = vunpack.c.l.b16 %v133
    %v361 = vunpack.c.l.b16 %v134
    %v362 = vunpack.c.l.b16 %v135
    %v363 = vunpack.c.l.b16 %v136
    %v364 = vunpack.c.l.b16 %v137
    %v365 = vunpack.c.l.b16 %v138
    %v366 = vunpack.c.l.b16 %v139
    %v367 = vunpack.c.l.b16 %v140
    %v368 = vunpack.c.l.b16 %v141
    %v369 = vunpack.c.l.b16 %v142
    %v370 = vunpack.c.l.b16 %v143
    %v371 = vunpack.c.l.b16 %v144
    %v372 = vunpack.c.l.b16 %v145
    %v373 = vunpack.c.l.b16 %v146
    %v374 = vunpack.c.l.b16 %v147
    %v375 = vunpack.c.l.b16 %v148
    %v376 = vunpack.c.l.b16 %v149
    %v377 = vunpack.c.l.b16 %v150
    %v378 = vunpack.c.l.b16 %v151
    %v379 = vunpack.c.l.b16 %v152
    %v380 = vunpack.c.l.b16 %v153
    %v381 = vunpack.c.l.b16 %v154
    %v382 = vunpack.c.l.b16 %v155
    %v383 = vunpack.c.l.b16 %v156
    %v384 = vunpack.c.l.b16 %v157
    %v385 = vunpack.c.l.b16 %v158
    %v386 = vunpack.c.l.b16 %v159
    %v387 = vunpack.c.l.b16 %v160
    %v388 = vunpack.c.l.b16 %v161
    %v389 = vpack.c.b16 %v292, %v291
    %v390 = vpack.c.b16 %v294, %v293
    %v391 = vpack.c.b16 %v296, %v295
    %v392 = vpack.c.b16 %v298, %v297
    %v393 = vpack.c.b16 %v300, %v299
    %v394 = vpack.c.b16 %v302, %v301
    %v395 = vpack.c.b16 %v304, %v303
    %v396 = vpack.c.b16 %v306, %v305
    %v397 = vpack.c.b16 %v308, %v307
    %v398 = vpack.c.b16 %v310, %v309
    %v399 = vpack.c.b16 %v312, %v311
    %v400 = vpack.c.b16 %v314, %v313
    %v401 = vpack.c.b16 %v316, %v315
    %v402 = vpack.c.b16 %v318, %v317
    %v403 = vpack.c.b16 %v320, %v319
    %v404 = vpack.c.b16 %v322, %v321
    %v405 = vpack.c.b16 %v324, %v323
    %v406 = vpack.c.b16 %v326, %v325
    %v407 = vpack.c.b16 %v328, %v327
    %v408 = vpack.c.b16 %v330, %v329
    %v409 = vpack.c.b16 %v332, %v331
    %v410 = vpack.c.b16 %v334, %v333
    %v411 = vpack.c.b16 %v336, %v335
    %v412 = vpack.c.b16 %v338, %v337
    %v413 = vpack.c.b16 %v340, %v339
    %v414 = vpack.c.b16 %v342, %v341
    %v415 = vpack.c.b16 %v344, %v343
    %v416 = vpack.c.b16 %v346, %v345
    %v417 = vpack.c.b16 %v348, %v347
    %v418 = vpack.c.b16 %v350, %v349
    %v419 = vpack.c.b16 %v352, %v351
    %v420 = vpack.c.b16 %v354, %v353
    %v421 = vpack.c.b16 %v356, %v355
    %v422 = vpack.c.b16 %v358, %v357
    %v423 = vpack.c.b16 %v360, %v359
    %v424 = vpack.c.b16 %v362, %v361
    %v425 = vpack.c.b16 %v364, %v363
    %v426 = vpack.c.b16 %v366, %v365
    %v427 = vpack.c.b16 %v368, %v367
    %v428 = vpack.c.b16 %v370, %v369
    %v429 = vpack.c.b16 %v372, %v371
    %v430 = vpack.c.b16 %v374, %v373
    %v431 = vpack.c.b16 %v376, %v375
    %v432 = vpack.c.b16 %v378, %v377
    %v433 = vpack.c.b16 %v380, %v379
    %v434 = vpack.c.b16 %v382, %v381
    %v435 = vpack.c.b16 %v384, %v383
    %v436 = vpack.c.b16 %v386, %v385
    %v437 = vpack.c.b16 %v388, %v387
    %vm487 = vcmask 130048
    %v489 = vsel %vm487, %v186, 0
    %491 = vmatprep.subr.bf16.mxu0 0
    %492 = vmatpush1.bf16.msra.mxu0 %v389
    %493 = vmatprep.subr.bf16.mxu0 0
    %494 = vmatpush1.bf16.msra.mxu0 %v390
    %495 = vmatprep.subr.bf16.mxu0 0
    %496 = vmatpush1.bf16.msra.mxu0 %v391
    %497 = vmatprep.subr.bf16.mxu0 0
    %498 = vmatpush1.bf16.msra.mxu0 %v392
    %499 = vmatprep.subr.bf16.mxu0 0
    %500 = vmatpush1.bf16.msra.mxu0 %v393
    %501 = vmatprep.subr.bf16.mxu0 0
    %502 = vmatpush1.bf16.msra.mxu0 %v394
    %503 = vmatprep.subr.bf16.mxu0 0
    %504 = vmatpush1.bf16.msra.mxu0 %v395
    %505 = vmatprep.subr.bf16.mxu0 0
    %506 = vmatpush1.bf16.msra.mxu0 %v396
    %507 = vmatprep.subr.bf16.mxu0 0
    %508 = vmatpush1.bf16.msra.mxu0 %v397
    %509 = vmatprep.subr.bf16.mxu0 0
    %510 = vmatpush1.bf16.msra.mxu0 %v398
    %511 = vmatprep.subr.bf16.mxu0 0
    %512 = vmatpush1.bf16.msra.mxu0 %v399
    %513 = vmatprep.subr.bf16.mxu0 0
    %514 = vmatpush1.bf16.msra.mxu0 %v400
    %515 = vmatprep.subr.bf16.mxu0 0
    %516 = vmatpush1.bf16.msra.mxu0 %v401
    %517 = vmatprep.subr.bf16.mxu0 0
    %518 = vmatpush1.bf16.msra.mxu0 %v402
    %519 = vmatprep.subr.bf16.mxu0 0
    %520 = vmatpush1.bf16.msra.mxu0 %v403
    %521 = vmatprep.subr.bf16.mxu0 0
    %522 = vmatpush1.bf16.msra.mxu0 %v404
    %523 = vmatprep.mubr.bf16.mxu0 %v181
    %524 = vmatmul.mubr.bf16.gmra.mrb[0].mxu0 %v180
    %v525 = vpop.f32.mrb[0].mxu0
    %v526 = vadd.f32 %v167, %v525
    %v527 = vpop.f32.mrb[0].mxu0
    %v528 = vpop.f32.mrb[0].mxu0
    %v529 = vpop.f32.mrb[0].mxu0
    %530 = vdwg.mxu0
    %531 = vmatprep.subr.bf16.mxu0 0
    %532 = vmatpush1.bf16.msra.mxu0 %v405
    %533 = vmatprep.subr.bf16.mxu0 0
    %534 = vmatpush1.bf16.msra.mxu0 %v406
    %535 = vmatprep.subr.bf16.mxu0 0
    %536 = vmatpush1.bf16.msra.mxu0 %v407
    %537 = vmatprep.subr.bf16.mxu0 0
    %538 = vmatpush1.bf16.msra.mxu0 %v408
    %539 = vmatprep.subr.bf16.mxu0 0
    %540 = vmatpush1.bf16.msra.mxu0 %v409
    %541 = vmatprep.subr.bf16.mxu0 0
    %542 = vmatpush1.bf16.msra.mxu0 %v410
    %543 = vmatprep.subr.bf16.mxu0 0
    %544 = vmatpush1.bf16.msra.mxu0 %v411
    %545 = vmatprep.subr.bf16.mxu0 0
    %546 = vmatpush1.bf16.msra.mxu0 %v412
    %547 = vmatprep.subr.bf16.mxu0 0
    %548 = vmatpush1.bf16.msra.mxu0 %v413
    %549 = vmatprep.subr.bf16.mxu0 0
    %550 = vmatpush1.bf16.msra.mxu0 %v414
    %551 = vmatprep.subr.bf16.mxu0 0
    %552 = vmatpush1.bf16.msra.mxu0 %v415
    %553 = vmatprep.subr.bf16.mxu0 0
    %554 = vmatpush1.bf16.msra.mxu0 %v416
    %555 = vmatprep.subr.bf16.mxu0 0
    %556 = vmatpush1.bf16.msra.mxu0 %v417
    %557 = vmatprep.subr.bf16.mxu0 0
    %558 = vmatpush1.bf16.msra.mxu0 %v418
    %559 = vmatprep.subr.bf16.mxu0 0
    %560 = vmatpush1.bf16.msra.mxu0 %v419
    %561 = vmatprep.subr.bf16.mxu0 0
    %562 = vmatpush1.bf16.msra.mxu0 %v420
    %563 = vmatprep.mubr.bf16.mxu0 %v183
    %564 = vmatmul.mubr.bf16.gmra.mrb[0].mxu0 %v182
    %v565 = vpop.f32.mrb[0].mxu0
    %v566 = vadd.f32 %v526, %v565
    %v567 = vpop.f32.mrb[0].mxu0
    %v568 = vpop.f32.mrb[0].mxu0
    %v569 = vpop.f32.mrb[0].mxu0
    %570 = vdwg.mxu0
    %571 = vmatprep.subr.bf16.mxu0 0
    %572 = vmatpush1.bf16.msra.mxu0 %v421
    %573 = vmatprep.subr.bf16.mxu0 0
    %574 = vmatpush1.bf16.msra.mxu0 %v422
    %575 = vmatprep.subr.bf16.mxu0 0
    %576 = vmatpush1.bf16.msra.mxu0 %v423
    %577 = vmatprep.subr.bf16.mxu0 0
    %578 = vmatpush1.bf16.msra.mxu0 %v424
    %579 = vmatprep.subr.bf16.mxu0 0
    %580 = vmatpush1.bf16.msra.mxu0 %v425
    %581 = vmatprep.subr.bf16.mxu0 0
    %582 = vmatpush1.bf16.msra.mxu0 %v426
    %583 = vmatprep.subr.bf16.mxu0 0
    %584 = vmatpush1.bf16.msra.mxu0 %v427
    %585 = vmatprep.subr.bf16.mxu0 0
    %586 = vmatpush1.bf16.msra.mxu0 %v428
    %587 = vmatprep.subr.bf16.mxu0 0
    %588 = vmatpush1.bf16.msra.mxu0 %v429
    %589 = vmatprep.subr.bf16.mxu0 0
    %590 = vmatpush1.bf16.msra.mxu0 %v430
    %591 = vmatprep.subr.bf16.mxu0 0
    %592 = vmatpush1.bf16.msra.mxu0 %v431
    %593 = vmatprep.subr.bf16.mxu0 0
    %594 = vmatpush1.bf16.msra.mxu0 %v432
    %595 = vmatprep.subr.bf16.mxu0 0
    %596 = vmatpush1.bf16.msra.mxu0 %v433
    %597 = vmatprep.subr.bf16.mxu0 0
    %598 = vmatpush1.bf16.msra.mxu0 %v434
    %599 = vmatprep.subr.bf16.mxu0 0
    %600 = vmatpush1.bf16.msra.mxu0 %v435
    %601 = vmatprep.subr.bf16.mxu0 0
    %602 = vmatpush1.bf16.msra.mxu0 %v436
    %603 = vmatprep.mubr.bf16.mxu0 %v185
    %604 = vmatmul.mubr.bf16.gmra.mrb[0].mxu0 %v184
    %v605 = vpop.f32.mrb[0].mxu0
    %v606 = vadd.f32 %v566, %v605
    %v607 = vpop.f32.mrb[0].mxu0
    %v608 = vpop.f32.mrb[0].mxu0
    %v609 = vpop.f32.mrb[0].mxu0
    %610 = vdwg.mxu0
    %611 = vmatprep.subr.bf16.mxu0 0
    %612 = vmatpush1.bf16.msra.mxu0 %v437
    %613 = vmatprep.subr.bf16.mxu0 0
    %614 = vmatpush1.bf16.msra.mxu0 0
    %615 = vmatprep.subr.bf16.mxu0 0
    %616 = vmatpush1.bf16.msra.mxu0 0
    %617 = vmatprep.subr.bf16.mxu0 0
    %618 = vmatpush1.bf16.msra.mxu0 0
    %619 = vmatprep.subr.bf16.mxu0 0
    %620 = vmatpush1.bf16.msra.mxu0 0
    %621 = vmatprep.subr.bf16.mxu0 0
    %622 = vmatpush1.bf16.msra.mxu0 0
    %623 = vmatprep.subr.bf16.mxu0 0
    %624 = vmatpush1.bf16.msra.mxu0 0
    %625 = vmatprep.subr.bf16.mxu0 0
    %626 = vmatpush1.bf16.msra.mxu0 0
    %627 = vmatprep.subr.bf16.mxu0 0
    %628 = vmatpush1.bf16.msra.mxu0 0
    %629 = vmatprep.subr.bf16.mxu0 0
    %630 = vmatpush1.bf16.msra.mxu0 0
    %631 = vmatprep.subr.bf16.mxu0 0
    %632 = vmatpush1.bf16.msra.mxu0 0
    %633 = vmatprep.subr.bf16.mxu0 0
    %634 = vmatpush1.bf16.msra.mxu0 0
    %635 = vmatprep.subr.bf16.mxu0 0
    %636 = vmatpush1.bf16.msra.mxu0 0
    %637 = vmatprep.subr.bf16.mxu0 0
    %638 = vmatpush1.bf16.msra.mxu0 0
    %639 = vmatprep.subr.bf16.mxu0 0
    %640 = vmatpush1.bf16.msra.mxu0 0
    %641 = vmatprep.subr.bf16.mxu0 0
    %642 = vmatpush1.bf16.msra.mxu0 0
    %643 = vmatprep.mubr.bf16.mxu0 0
    %644 = vmatmul.mubr.bf16.gmra.mrb[0].mxu0 %v489
    %v645 = vpop.f32.mrb[0].mxu0
    %v646 = vadd.f32 %v606, %v645
    %v647 = vpop.f32.mrb[0].mxu0
    %v648 = vpop.f32.mrb[0].mxu0
    %v649 = vpop.f32.mrb[0].mxu0
    %650 = vdwg.mxu0
    %v651 = vtanh.pop %v646
    %v652 = vpack.c.bf16 %v651, %v651
    %v653 = vld [vmem:[%s3] sm:$0xf]
    %v654 = vld [vmem:[%s3 + $0x4] sm:$0xf]
    %v655 = vld [vmem:[%s3 + $0x8] sm:$0xf]
    %v656 = vld [vmem:[%s3 + $0xc] sm:$0xf]
    %v657 = vld [vmem:[%s3 + $0x10] sm:$0xf]
    %v658 = vld [vmem:[%s3 + $0x14] sm:$0xf]
    %v659 = vld [vmem:[%s3 + $0x18] sm:$0xf]
    %v660 = vld [vmem:[%s3 + $0x1c] sm:$0xf]
    %v661 = vld [vmem:[%s3 + $0x20] sm:$0xf]
    %v662 = vld [vmem:[%s3 + $0x24] sm:$0xf]
    %v663 = vld [vmem:[%s3 + $0x28] sm:$0xf]
    %v664 = vld [vmem:[%s3 + $0x2c] sm:$0xf]
    %v665 = vld [vmem:[%s3 + $0x30] sm:$0xf]
    %v666 = vld [vmem:[%s3 + $0x34] sm:$0xf]
    %v667 = vld [vmem:[%s3 + $0x38] sm:$0xf]
    %v668 = vld [vmem:[%s3 + $0x3c] sm:$0xf]
    %v669 = vld [vmem:[%s4] sm:$0x1]
    %v671 = vlaneseq
    %v672 = vshrl.u32 %v671, 7
    %v673 = vsub.s32 0, %v672
    %v674 = vrot.slane %v669, %v673
    %v692 = vunpack.c.l.b16 %v653
    %v693 = vunpack.c.l.b16 %v654
    %v694 = vunpack.c.l.b16 %v655
    %v695 = vunpack.c.l.b16 %v656
    %v696 = vunpack.c.l.b16 %v657
    %v697 = vunpack.c.l.b16 %v658
    %v698 = vunpack.c.l.b16 %v659
    %v699 = vunpack.c.l.b16 %v660
    %v700 = vunpack.c.l.b16 %v661
    %v701 = vunpack.c.l.b16 %v662
    %v702 = vunpack.c.l.b16 %v663
    %v703 = vunpack.c.l.b16 %v664
    %v704 = vunpack.c.l.b16 %v665
    %v705 = vunpack.c.l.b16 %v666
    %v706 = vunpack.c.l.b16 %v667
    %v707 = vunpack.c.l.b16 %v668
    %v708 = vpack.c.b16 %v693, %v692
    %v709 = vpack.c.b16 %v695, %v694
    %v710 = vpack.c.b16 %v697, %v696
    %v711 = vpack.c.b16 %v699, %v698
    %v712 = vpack.c.b16 %v701, %v700
    %v713 = vpack.c.b16 %v703, %v702
    %v714 = vpack.c.b16 %v705, %v704
    %v715 = vpack.c.b16 %v707, %v706
    %724 = vmatprep.subr.bf16.mxu0 0
    %725 = vmatpush1.bf16.msra.mxu0 %v708
    %726 = vmatprep.subr.bf16.mxu0 0
    %727 = vmatpush1.bf16.msra.mxu0 %v709
    %728 = vmatprep.subr.bf16.mxu0 0
    %729 = vmatpush1.bf16.msra.mxu0 %v710
    %730 = vmatprep.subr.bf16.mxu0 0
    %731 = vmatpush1.bf16.msra.mxu0 %v711
    %732 = vmatprep.subr.bf16.mxu0 0
    %733 = vmatpush1.bf16.msra.mxu0 %v712
    %734 = vmatprep.subr.bf16.mxu0 0
    %735 = vmatpush1.bf16.msra.mxu0 %v713
    %736 = vmatprep.subr.bf16.mxu0 0
    %737 = vmatpush1.bf16.msra.mxu0 %v714
    %738 = vmatprep.subr.bf16.mxu0 0
    %739 = vmatpush1.bf16.msra.mxu0 %v715
    %740 = vmatprep.subr.bf16.mxu0 0
    %741 = vmatpush1.bf16.msra.mxu0 0
    %742 = vmatprep.subr.bf16.mxu0 0
    %743 = vmatpush1.bf16.msra.mxu0 0
    %744 = vmatprep.subr.bf16.mxu0 0
    %745 = vmatpush1.bf16.msra.mxu0 0
    %746 = vmatprep.subr.bf16.mxu0 0
    %747 = vmatpush1.bf16.msra.mxu0 0
    %748 = vmatprep.subr.bf16.mxu0 0
    %749 = vmatpush1.bf16.msra.mxu0 0
    %750 = vmatprep.subr.bf16.mxu0 0
    %751 = vmatpush1.bf16.msra.mxu0 0
    %752 = vmatprep.subr.bf16.mxu0 0
    %753 = vmatpush1.bf16.msra.mxu0 0
    %754 = vmatprep.subr.bf16.mxu0 0
    %755 = vmatpush1.bf16.msra.mxu0 0
    %756 = vmatprep.mubr.bf16.mxu0 0
    %757 = vmatmul.mubr.bf16.gmra.mrb[0].mxu0 %v652
    %v758 = vpop.f32.mrb[0].mxu0
    %v759 = vadd.f32 %v674, %v758
    %v760 = vpop.f32.mrb[0].mxu0
    %v761 = vpop.f32.mrb[0].mxu0
    %v762 = vpop.f32.mrb[0].mxu0
    %763 = vdwg.mxu0
    %v764 = vtanh.pop %v759
    %v765 = vpack.c.bf16 %v764, %v764
    %v766 = vld [vmem:[%s5] sm:$0xf]
    %v767 = vld [vmem:[%s5 + $0x4] sm:$0xf]
    %v768 = vld [vmem:[%s5 + $0x8] sm:$0xf]
    %v769 = vld [vmem:[%s5 + $0xc] sm:$0xf]
    %v770 = vld [vmem:[%s5 + $0x10] sm:$0xf]
    %v771 = vld [vmem:[%s5 + $0x14] sm:$0xf]
    %v772 = vld [vmem:[%s5 + $0x18] sm:$0xf]
    %v773 = vld [vmem:[%s5 + $0x1c] sm:$0xf]
    %v774 = vld [vmem:[%s6] sm:$0x1]
    %v776 = vlaneseq
    %v777 = vshrl.u32 %v776, 7
    %v778 = vsub.s32 0, %v777
    %v779 = vrot.slane %v774, %v778
    %v789 = vunpack.c.l.b16 %v766
    %v790 = vunpack.c.l.b16 %v767
    %v791 = vunpack.c.l.b16 %v768
    %v792 = vunpack.c.l.b16 %v769
    %v793 = vunpack.c.l.b16 %v770
    %v794 = vunpack.c.l.b16 %v771
    %v795 = vunpack.c.l.b16 %v772
    %v796 = vunpack.c.l.b16 %v773
    %v797 = vpack.c.b16 %v790, %v789
    %v798 = vpack.c.b16 %v792, %v791
    %v799 = vpack.c.b16 %v794, %v793
    %v800 = vpack.c.b16 %v796, %v795
    %vm805 = vcmask 523264
    %v807 = vsel %vm805, %v765, 0
    %809 = vmatprep.subr.bf16.mxu0 0
    %810 = vmatpush1.bf16.msra.mxu0 %v797
    %811 = vmatprep.subr.bf16.mxu0 0
    %812 = vmatpush1.bf16.msra.mxu0 %v798
    %813 = vmatprep.subr.bf16.mxu0 0
    %814 = vmatpush1.bf16.msra.mxu0 %v799
    %815 = vmatprep.subr.bf16.mxu0 0
    %816 = vmatpush1.bf16.msra.mxu0 %v800
    %817 = vmatprep.subr.bf16.mxu0 0
    %818 = vmatpush1.bf16.msra.mxu0 0
    %819 = vmatprep.subr.bf16.mxu0 0
    %820 = vmatpush1.bf16.msra.mxu0 0
    %821 = vmatprep.subr.bf16.mxu0 0
    %822 = vmatpush1.bf16.msra.mxu0 0
    %823 = vmatprep.subr.bf16.mxu0 0
    %824 = vmatpush1.bf16.msra.mxu0 0
    %825 = vmatprep.subr.bf16.mxu0 0
    %826 = vmatpush1.bf16.msra.mxu0 0
    %827 = vmatprep.subr.bf16.mxu0 0
    %828 = vmatpush1.bf16.msra.mxu0 0
    %829 = vmatprep.subr.bf16.mxu0 0
    %830 = vmatpush1.bf16.msra.mxu0 0
    %831 = vmatprep.subr.bf16.mxu0 0
    %832 = vmatpush1.bf16.msra.mxu0 0
    %833 = vmatprep.subr.bf16.mxu0 0
    %834 = vmatpush1.bf16.msra.mxu0 0
    %835 = vmatprep.subr.bf16.mxu0 0
    %836 = vmatpush1.bf16.msra.mxu0 0
    %837 = vmatprep.subr.bf16.mxu0 0
    %838 = vmatpush1.bf16.msra.mxu0 0
    %839 = vmatprep.subr.bf16.mxu0 0
    %840 = vmatpush1.bf16.msra.mxu0 0
    %841 = vmatprep.mubr.bf16.mxu0 0
    %842 = vmatmul.mubr.bf16.gmra.mrb[0].mxu0 %v807
    %v843 = vpop.f32.mrb[0].mxu0
    %v844 = vadd.f32 %v779, %v843
    %v845 = vpop.f32.mrb[0].mxu0
    %v846 = vpop.f32.mrb[0].mxu0
    %v847 = vpop.f32.mrb[0].mxu0
    %848 = vdwg.mxu0
    %v849 = vtanh.pop %v844
    %v850 = vpack.c.bf16 %v849, %v849
    %v851 = vld [vmem:[%s7] sm:$0xf]
    %v852 = vld [vmem:[%s7 + $0x4] sm:$0xf]
    %v853 = vld [vmem:[%s7 + $0x8] sm:$0xf]
    %v854 = vld [vmem:[%s7 + $0xc] sm:$0xf]
    %v855 = vld [vmem:[%s7 + $0x10] sm:$0xf]
    %v856 = vld [vmem:[%s7 + $0x14] sm:$0xf]
    %v857 = vld [vmem:[%s7 + $0x18] sm:$0xf]
    %v858 = vld [vmem:[%s7 + $0x1c] sm:$0xf]
    %v859 = vld [vmem:[%s7 + $0x20] sm:$0xf]
    %v860 = vld [vmem:[%s7 + $0x24] sm:$0xf]
    %v861 = vld [vmem:[%s7 + $0x28] sm:$0xf]
    %v862 = vld [vmem:[%s7 + $0x2c] sm:$0xf]
    %v863 = vld [vmem:[%s7 + $0x30] sm:$0xf]
    %v864 = vld [vmem:[%s7 + $0x34] sm:$0xf]
    %v865 = vld [vmem:[%s7 + $0x38] sm:$0xf]
    %v866 = vld [vmem:[%s7 + $0x3c] sm:$0xf]
    %v867 = vld [vmem:[%s8] sm:$0x1]
    %v869 = vlaneseq
    %v870 = vshrl.u32 %v869, 7
    %v871 = vsub.s32 0, %v870
    %v872 = vrot.slane %v867, %v871
    %v890 = vunpack.c.l.b16 %v851
    %v891 = vunpack.c.l.b16 %v852
    %v892 = vunpack.c.l.b16 %v853
    %v893 = vunpack.c.l.b16 %v854
    %v894 = vunpack.c.l.b16 %v855
    %v895 = vunpack.c.l.b16 %v856
    %v896 = vunpack.c.l.b16 %v857
    %v897 = vunpack.c.l.b16 %v858
    %v898 = vunpack.c.l.b16 %v859
    %v899 = vunpack.c.l.b16 %v860
    %v900 = vunpack.c.l.b16 %v861
    %v901 = vunpack.c.l.b16 %v862
    %v902 = vunpack.c.l.b16 %v863
    %v903 = vunpack.c.l.b16 %v864
    %v904 = vunpack.c.l.b16 %v865
    %v905 = vunpack.c.l.b16 %v866
    %v906 = vpack.c.b16 %v891, %v890
    %v907 = vpack.c.b16 %v893, %v892
    %v908 = vpack.c.b16 %v895, %v894
    %v909 = vpack.c.b16 %v897, %v896
    %v910 = vpack.c.b16 %v899, %v898
    %v911 = vpack.c.b16 %v901, %v900
    %v912 = vpack.c.b16 %v903, %v902
    %v913 = vpack.c.b16 %v905, %v904
    %922 = vmatprep.subr.bf16.mxu0 0
    %923 = vmatpush1.bf16.msra.mxu0 %v906
    %924 = vmatprep.subr.bf16.mxu0 0
    %925 = vmatpush1.bf16.msra.mxu0 %v907
    %926 = vmatprep.subr.bf16.mxu0 0
    %927 = vmatpush1.bf16.msra.mxu0 %v908
    %928 = vmatprep.subr.bf16.mxu0 0
    %929 = vmatpush1.bf16.msra.mxu0 %v909
    %930 = vmatprep.subr.bf16.mxu0 0
    %931 = vmatpush1.bf16.msra.mxu0 %v910
    %932 = vmatprep.subr.bf16.mxu0 0
    %933 = vmatpush1.bf16.msra.mxu0 %v911
    %934 = vmatprep.subr.bf16.mxu0 0
    %935 = vmatpush1.bf16.msra.mxu0 %v912
    %936 = vmatprep.subr.bf16.mxu0 0
    %937 = vmatpush1.bf16.msra.mxu0 %v913
    %938 = vmatprep.subr.bf16.mxu0 0
    %939 = vmatpush1.bf16.msra.mxu0 0
    %940 = vmatprep.subr.bf16.mxu0 0
    %941 = vmatpush1.bf16.msra.mxu0 0
    %942 = vmatprep.subr.bf16.mxu0 0
    %943 = vmatpush1.bf16.msra.mxu0 0
    %944 = vmatprep.subr.bf16.mxu0 0
    %945 = vmatpush1.bf16.msra.mxu0 0
    %946 = vmatprep.subr.bf16.mxu0 0
    %947 = vmatpush1.bf16.msra.mxu0 0
    %948 = vmatprep.subr.bf16.mxu0 0
    %949 = vmatpush1.bf16.msra.mxu0 0
    %950 = vmatprep.subr.bf16.mxu0 0
    %951 = vmatpush1.bf16.msra.mxu0 0
    %952 = vmatprep.subr.bf16.mxu0 0
    %953 = vmatpush1.bf16.msra.mxu0 0
    %954 = vmatprep.mubr.bf16.mxu0 0
    %955 = vmatmul.mubr.bf16.gmra.mrb[0].mxu0 %v850
    %v956 = vpop.f32.mrb[0].mxu0
    %v957 = vadd.f32 %v872, %v956
    %v958 = vpop.f32.mrb[0].mxu0
    %v959 = vpop.f32.mrb[0].mxu0
    %v960 = vpop.f32.mrb[0].mxu0
    %961 = vdwg.mxu0
    %vm962 = vcmask 15360
    %963 = vst.msk [vmem:[%s17] sm:$0xff] %vm962, %v957
    %v964 = vpack.c.bf16 %v957, %v957
    %v965 = vld [vmem:[%s9] sm:$0xf]
    %v966 = vld [vmem:[%s9 + $0x4] sm:$0xf]
    %v967 = vld [vmem:[%s9 + $0x8] sm:$0xf]
    %v968 = vld [vmem:[%s9 + $0xc] sm:$0xf]
    %v969 = vld [vmem:[%s9 + $0x10] sm:$0xf]
    %v970 = vld [vmem:[%s9 + $0x14] sm:$0xf]
    %v971 = vld [vmem:[%s9 + $0x18] sm:$0xf]
    %v972 = vld [vmem:[%s9 + $0x1c] sm:$0xf]
    %v973 = vld [vmem:[%s9 + $0x20] sm:$0xf]
    %v974 = vld [vmem:[%s9 + $0x24] sm:$0xf]
    %v975 = vld [vmem:[%s9 + $0x28] sm:$0xf]
    %v976 = vld [vmem:[%s9 + $0x2c] sm:$0xf]
    %v977 = vld [vmem:[%s9 + $0x30] sm:$0xf]
    %v978 = vld [vmem:[%s9 + $0x34] sm:$0xf]
    %v979 = vld [vmem:[%s9 + $0x38] sm:$0xf]
    %v980 = vld [vmem:[%s9 + $0x3c] sm:$0xf]
    %v981 = vld [vmem:[%s10] sm:$0x1]
    %v983 = vlaneseq
    %v984 = vshrl.u32 %v983, 7
    %v985 = vsub.s32 0, %v984
    %v986 = vrot.slane %v981, %v985
    %v1004 = vunpack.c.l.b16 %v965
    %v1005 = vunpack.c.l.b16 %v966
    %v1006 = vunpack.c.l.b16 %v967
    %v1007 = vunpack.c.l.b16 %v968
    %v1008 = vunpack.c.l.b16 %v969
    %v1009 = vunpack.c.l.b16 %v970
    %v1010 = vunpack.c.l.b16 %v971
    %v1011 = vunpack.c.l.b16 %v972
    %v1012 = vunpack.c.l.b16 %v973
    %v1013 = vunpack.c.l.b16 %v974
    %v1014 = vunpack.c.l.b16 %v975
    %v1015 = vunpack.c.l.b16 %v976
    %v1016 = vunpack.c.l.b16 %v977
    %v1017 = vunpack.c.l.b16 %v978
    %v1018 = vunpack.c.l.b16 %v979
    %v1019 = vunpack.c.l.b16 %v980
    %v1020 = vpack.c.b16 %v1005, %v1004
    %v1021 = vpack.c.b16 %v1007, %v1006
    %v1022 = vpack.c.b16 %v1009, %v1008
    %v1023 = vpack.c.b16 %v1011, %v1010
    %v1024 = vpack.c.b16 %v1013, %v1012
    %v1025 = vpack.c.b16 %v1015, %v1014
    %v1026 = vpack.c.b16 %v1017, %v1016
    %v1027 = vpack.c.b16 %v1019, %v1018
    %1036 = vmatprep.subr.bf16.mxu0 0
    %1037 = vmatpush1.bf16.msra.mxu0 %v1020
    %1038 = vmatprep.subr.bf16.mxu0 0
    %1039 = vmatpush1.bf16.msra.mxu0 %v1021
    %1040 = vmatprep.subr.bf16.mxu0 0
    %1041 = vmatpush1.bf16.msra.mxu0 %v1022
    %1042 = vmatprep.subr.bf16.mxu0 0
    %1043 = vmatpush1.bf16.msra.mxu0 %v1023
    %1044 = vmatprep.subr.bf16.mxu0 0
    %1045 = vmatpush1.bf16.msra.mxu0 %v1024
    %1046 = vmatprep.subr.bf16.mxu0 0
    %1047 = vmatpush1.bf16.msra.mxu0 %v1025
    %1048 = vmatprep.subr.bf16.mxu0 0
    %1049 = vmatpush1.bf16.msra.mxu0 %v1026
    %1050 = vmatprep.subr.bf16.mxu0 0
    %1051 = vmatpush1.bf16.msra.mxu0 %v1027
    %1052 = vmatprep.subr.bf16.mxu0 0
    %1053 = vmatpush1.bf16.msra.mxu0 0
    %1054 = vmatprep.subr.bf16.mxu0 0
    %1055 = vmatpush1.bf16.msra.mxu0 0
    %1056 = vmatprep.subr.bf16.mxu0 0
    %1057 = vmatpush1.bf16.msra.mxu0 0
    %1058 = vmatprep.subr.bf16.mxu0 0
    %1059 = vmatpush1.bf16.msra.mxu0 0
    %1060 = vmatprep.subr.bf16.mxu0 0
    %1061 = vmatpush1.bf16.msra.mxu0 0
    %1062 = vmatprep.subr.bf16.mxu0 0
    %1063 = vmatpush1.bf16.msra.mxu0 0
    %1064 = vmatprep.subr.bf16.mxu0 0
    %1065 = vmatpush1.bf16.msra.mxu0 0
    %1066 = vmatprep.subr.bf16.mxu0 0
    %1067 = vmatpush1.bf16.msra.mxu0 0
    %1068 = vmatprep.mubr.bf16.mxu0 0
    %1069 = vmatmul.mubr.bf16.gmra.mrb[0].mxu0 %v964
    %v1070 = vpop.f32.mrb[0].mxu0
    %v1071 = vadd.f32 %v986, %v1070
    %v1072 = vpop.f32.mrb[0].mxu0
    %v1073 = vpop.f32.mrb[0].mxu0
    %v1074 = vpop.f32.mrb[0].mxu0
    %1075 = vdwg.mxu0
    %v1076 = vtanh.pop %v1071
    %v1077 = vpack.c.bf16 %v1076, %v1076
    %v1078 = vld [vmem:[%s11] sm:$0xf]
    %v1079 = vld [vmem:[%s11 + $0x4] sm:$0xf]
    %v1080 = vld [vmem:[%s11 + $0x8] sm:$0xf]
    %v1081 = vld [vmem:[%s11 + $0xc] sm:$0xf]
    %v1082 = vld [vmem:[%s11 + $0x10] sm:$0xf]
    %v1083 = vld [vmem:[%s11 + $0x14] sm:$0xf]
    %v1084 = vld [vmem:[%s11 + $0x18] sm:$0xf]
    %v1085 = vld [vmem:[%s11 + $0x1c] sm:$0xf]
    %v1086 = vld [vmem:[%s11 + $0x20] sm:$0xf]
    %v1087 = vld [vmem:[%s11 + $0x24] sm:$0xf]
    %v1088 = vld [vmem:[%s11 + $0x28] sm:$0xf]
    %v1089 = vld [vmem:[%s11 + $0x2c] sm:$0xf]
    %v1090 = vld [vmem:[%s11 + $0x30] sm:$0xf]
    %v1091 = vld [vmem:[%s11 + $0x34] sm:$0xf]
    %v1092 = vld [vmem:[%s11 + $0x38] sm:$0xf]
    %v1093 = vld [vmem:[%s11 + $0x3c] sm:$0xf]
    %v1094 = vld [vmem:[%s12] sm:$0x1]
    %v1096 = vlaneseq
    %v1097 = vshrl.u32 %v1096, 7
    %v1098 = vsub.s32 0, %v1097
    %v1099 = vrot.slane %v1094, %v1098
    %v1117 = vunpack.c.l.b16 %v1078
    %v1118 = vunpack.c.l.b16 %v1079
    %v1119 = vunpack.c.l.b16 %v1080
    %v1120 = vunpack.c.l.b16 %v1081
    %v1121 = vunpack.c.l.b16 %v1082
    %v1122 = vunpack.c.l.b16 %v1083
    %v1123 = vunpack.c.l.b16 %v1084
    %v1124 = vunpack.c.l.b16 %v1085
    %v1125 = vunpack.c.l.b16 %v1086
    %v1126 = vunpack.c.l.b16 %v1087
    %v1127 = vunpack.c.l.b16 %v1088
    %v1128 = vunpack.c.l.b16 %v1089
    %v1129 = vunpack.c.l.b16 %v1090
    %v1130 = vunpack.c.l.b16 %v1091
    %v1131 = vunpack.c.l.b16 %v1092
    %v1132 = vunpack.c.l.b16 %v1093
    %v1133 = vpack.c.b16 %v1118, %v1117
    %v1134 = vpack.c.b16 %v1120, %v1119
    %v1135 = vpack.c.b16 %v1122, %v1121
    %v1136 = vpack.c.b16 %v1124, %v1123
    %v1137 = vpack.c.b16 %v1126, %v1125
    %v1138 = vpack.c.b16 %v1128, %v1127
    %v1139 = vpack.c.b16 %v1130, %v1129
    %v1140 = vpack.c.b16 %v1132, %v1131
    %1149 = vmatprep.subr.bf16.mxu0 0
    %1150 = vmatpush1.bf16.msra.mxu0 %v1133
    %1151 = vmatprep.subr.bf16.mxu0 0
    %1152 = vmatpush1.bf16.msra.mxu0 %v1134
    %1153 = vmatprep.subr.bf16.mxu0 0
    %1154 = vmatpush1.bf16.msra.mxu0 %v1135
    %1155 = vmatprep.subr.bf16.mxu0 0
    %1156 = vmatpush1.bf16.msra.mxu0 %v1136
    %1157 = vmatprep.subr.bf16.mxu0 0
    %1158 = vmatpush1.bf16.msra.mxu0 %v1137
    %1159 = vmatprep.subr.bf16.mxu0 0
    %1160 = vmatpush1.bf16.msra.mxu0 %v1138
    %1161 = vmatprep.subr.bf16.mxu0 0
    %1162 = vmatpush1.bf16.msra.mxu0 %v1139
    %1163 = vmatprep.subr.bf16.mxu0 0
    %1164 = vmatpush1.bf16.msra.mxu0 %v1140
    %1165 = vmatprep.subr.bf16.mxu0 0
    %1166 = vmatpush1.bf16.msra.mxu0 0
    %1167 = vmatprep.subr.bf16.mxu0 0
    %1168 = vmatpush1.bf16.msra.mxu0 0
    %1169 = vmatprep.subr.bf16.mxu0 0
    %1170 = vmatpush1.bf16.msra.mxu0 0
    %1171 = vmatprep.subr.bf16.mxu0 0
    %1172 = vmatpush1.bf16.msra.mxu0 0
    %1173 = vmatprep.subr.bf16.mxu0 0
    %1174 = vmatpush1.bf16.msra.mxu0 0
    %1175 = vmatprep.subr.bf16.mxu0 0
    %1176 = vmatpush1.bf16.msra.mxu0 0
    %1177 = vmatprep.subr.bf16.mxu0 0
    %1178 = vmatpush1.bf16.msra.mxu0 0
    %1179 = vmatprep.subr.bf16.mxu0 0
    %1180 = vmatpush1.bf16.msra.mxu0 0
    %1181 = vmatprep.mubr.bf16.mxu0 0
    %1182 = vmatmul.mubr.bf16.gmra.mrb[0].mxu0 %v1077
    %v1183 = vpop.f32.mrb[0].mxu0
    %v1184 = vadd.f32 %v1099, %v1183
    %v1185 = vpop.f32.mrb[0].mxu0
    %v1186 = vpop.f32.mrb[0].mxu0
    %v1187 = vpop.f32.mrb[0].mxu0
    %1188 = vdwg.mxu0
    %v1189 = vtanh.pop %v1184
    %v1190 = vpack.c.bf16 %v1189, %v1189
    %v1191 = vld [vmem:[%s13] sm:$0xf]
    %v1192 = vld [vmem:[%s13 + $0x4] sm:$0xf]
    %v1193 = vld [vmem:[%s13 + $0x8] sm:$0xf]
    %v1194 = vld [vmem:[%s13 + $0xc] sm:$0xf]
    %v1195 = vld [vmem:[%s13 + $0x10] sm:$0xf]
    %v1196 = vld [vmem:[%s13 + $0x14] sm:$0xf]
    %v1197 = vld [vmem:[%s13 + $0x18] sm:$0xf]
    %v1198 = vld [vmem:[%s13 + $0x1c] sm:$0xf]
    %v1199 = vld [vmem:[%s14] sm:$0x1]
    %v1201 = vlaneseq
    %v1202 = vshrl.u32 %v1201, 7
    %v1203 = vsub.s32 0, %v1202
    %v1204 = vrot.slane %v1199, %v1203
    %v1214 = vunpack.c.l.b16 %v1191
    %v1215 = vunpack.c.l.b16 %v1192
    %v1216 = vunpack.c.l.b16 %v1193
    %v1217 = vunpack.c.l.b16 %v1194
    %v1218 = vunpack.c.l.b16 %v1195
    %v1219 = vunpack.c.l.b16 %v1196
    %v1220 = vunpack.c.l.b16 %v1197
    %v1221 = vunpack.c.l.b16 %v1198
    %v1222 = vpack.c.b16 %v1215, %v1214
    %v1223 = vpack.c.b16 %v1217, %v1216
    %v1224 = vpack.c.b16 %v1219, %v1218
    %v1225 = vpack.c.b16 %v1221, %v1220
    %v1231 = vsel %vm805, %v1190, 0
    %1233 = vmatprep.subr.bf16.mxu0 0
    %1234 = vmatpush1.bf16.msra.mxu0 %v1222
    %1235 = vmatprep.subr.bf16.mxu0 0
    %1236 = vmatpush1.bf16.msra.mxu0 %v1223
    %1237 = vmatprep.subr.bf16.mxu0 0
    %1238 = vmatpush1.bf16.msra.mxu0 %v1224
    %1239 = vmatprep.subr.bf16.mxu0 0
    %1240 = vmatpush1.bf16.msra.mxu0 %v1225
    %1241 = vmatprep.subr.bf16.mxu0 0
    %1242 = vmatpush1.bf16.msra.mxu0 0
    %1243 = vmatprep.subr.bf16.mxu0 0
    %1244 = vmatpush1.bf16.msra.mxu0 0
    %1245 = vmatprep.subr.bf16.mxu0 0
    %1246 = vmatpush1.bf16.msra.mxu0 0
    %1247 = vmatprep.subr.bf16.mxu0 0
    %1248 = vmatpush1.bf16.msra.mxu0 0
    %1249 = vmatprep.subr.bf16.mxu0 0
    %1250 = vmatpush1.bf16.msra.mxu0 0
    %1251 = vmatprep.subr.bf16.mxu0 0
    %1252 = vmatpush1.bf16.msra.mxu0 0
    %1253 = vmatprep.subr.bf16.mxu0 0
    %1254 = vmatpush1.bf16.msra.mxu0 0
    %1255 = vmatprep.subr.bf16.mxu0 0
    %1256 = vmatpush1.bf16.msra.mxu0 0
    %1257 = vmatprep.subr.bf16.mxu0 0
    %1258 = vmatpush1.bf16.msra.mxu0 0
    %1259 = vmatprep.subr.bf16.mxu0 0
    %1260 = vmatpush1.bf16.msra.mxu0 0
    %1261 = vmatprep.subr.bf16.mxu0 0
    %1262 = vmatpush1.bf16.msra.mxu0 0
    %1263 = vmatprep.subr.bf16.mxu0 0
    %1264 = vmatpush1.bf16.msra.mxu0 0
    %1265 = vmatprep.mubr.bf16.mxu0 0
    %1266 = vmatmul.mubr.bf16.gmra.mrb[0].mxu0 %v1231
    %v1267 = vpop.f32.mrb[0].mxu0
    %v1268 = vadd.f32 %v1204, %v1267
    %v1269 = vpop.f32.mrb[0].mxu0
    %v1270 = vpop.f32.mrb[0].mxu0
    %v1271 = vpop.f32.mrb[0].mxu0
    %1272 = vdwg.mxu0
    %v1273 = vtanh.pop %v1268
    %v1274 = vpack.c.bf16 %v1273, %v1273
    %v1275 = vld [vmem:[%s15] sm:$0xff]
    %v1276 = vld [vmem:[%s15 + $0x8] sm:$0xff]
    %v1277 = vld [vmem:[%s15 + $0x10] sm:$0xff]
    %v1278 = vld [vmem:[%s15 + $0x18] sm:$0xf]
    %v1279 = vld [vmem:[%s15 + $0x1c] sm:$0xff]
    %v1280 = vld [vmem:[%s15 + $0x24] sm:$0xff]
    %v1281 = vld [vmem:[%s15 + $0x2c] sm:$0xff]
    %v1282 = vld [vmem:[%s15 + $0x34] sm:$0xf]
    %v1283 = vld [vmem:[%s15 + $0x38] sm:$0xff]
    %v1284 = vld [vmem:[%s15 + $0x40] sm:$0xff]
    %v1285 = vld [vmem:[%s15 + $0x48] sm:$0xff]
    %v1286 = vld [vmem:[%s15 + $0x50] sm:$0xf]
    %v1287 = vld [vmem:[%s15 + $0x54] sm:$0xff]
    %v1288 = vld [vmem:[%s15 + $0x5c] sm:$0xff]
    %v1289 = vld [vmem:[%s15 + $0x64] sm:$0xff]
    %v1290 = vld [vmem:[%s15 + $0x6c] sm:$0xf]
    %v1291 = vld [vmem:[%s15 + $0x70] sm:$0xff]
    %v1292 = vld [vmem:[%s15 + $0x78] sm:$0xff]
    %v1293 = vld [vmem:[%s15 + $0x80] sm:$0xff]
    %v1294 = vld [vmem:[%s15 + $0x88] sm:$0xf]
    %v1295 = vld [vmem:[%s15 + $0x8c] sm:$0xff]
    %v1296 = vld [vmem:[%s15 + $0x94] sm:$0xff]
    %v1297 = vld [vmem:[%s15 + $0x9c] sm:$0xff]
    %v1298 = vld [vmem:[%s15 + $0xa4] sm:$0xf]
    %v1299 = vld [vmem:[%s15 + $0xa8] sm:$0xff]
    %v1300 = vld [vmem:[%s15 + $0xb0] sm:$0xff]
    %v1301 = vld [vmem:[%s15 + $0xb8] sm:$0xff]
    %v1302 = vld [vmem:[%s15 + $0xc0] sm:$0xf]
    %v1303 = vld [vmem:[%s15 + $0xc4] sm:$0xff]
    %v1304 = vld [vmem:[%s15 + $0xcc] sm:$0xff]
    %v1305 = vld [vmem:[%s15 + $0xd4] sm:$0xff]
    %v1306 = vld [vmem:[%s15 + $0xdc] sm:$0xf]
    %v1307 = vld [vmem:[%s15 + $0xe0] sm:$0xff]
    %v1308 = vld [vmem:[%s15 + $0xe8] sm:$0xff]
    %v1309 = vld [vmem:[%s15 + $0xf0] sm:$0xff]
    %v1310 = vld [vmem:[%s15 + $0xf8] sm:$0xf]
    %v1311 = vld [vmem:[%s15 + $0xfc] sm:$0xff]
    %v1312 = vld [vmem:[%s15 + $0x104] sm:$0xff]
    %v1313 = vld [vmem:[%s15 + $0x10c] sm:$0xff]
    %v1314 = vld [vmem:[%s15 + $0x114] sm:$0xf]
    %v1315 = vld [vmem:[%s15 + $0x118] sm:$0xff]
    %v1316 = vld [vmem:[%s15 + $0x120] sm:$0xff]
    %v1317 = vld [vmem:[%s15 + $0x128] sm:$0xff]
    %v1318 = vld [vmem:[%s15 + $0x130] sm:$0xf]
    %v1319 = vld [vmem:[%s15 + $0x134] sm:$0xff]
    %v1320 = vld [vmem:[%s15 + $0x13c] sm:$0xff]
    %v1321 = vld [vmem:[%s15 + $0x144] sm:$0xff]
    %v1322 = vld [vmem:[%s15 + $0x14c] sm:$0xf]
    %v1323 = vld [vmem:[%s15 + $0x150] sm:$0xff]
    %v1324 = vld [vmem:[%s15 + $0x158] sm:$0xff]
    %v1325 = vld [vmem:[%s15 + $0x160] sm:$0xff]
    %v1326 = vld [vmem:[%s15 + $0x168] sm:$0xf]
    %v1327 = vld [vmem:[%s15 + $0x16c] sm:$0xff]
    %v1328 = vld [vmem:[%s15 + $0x174] sm:$0xff]
    %v1329 = vld [vmem:[%s15 + $0x17c] sm:$0xff]
    %v1330 = vld [vmem:[%s15 + $0x184] sm:$0xf]
    %v1331 = vld [vmem:[%s15 + $0x188] sm:$0xff]
    %v1332 = vld [vmem:[%s15 + $0x190] sm:$0xff]
    %v1333 = vld [vmem:[%s15 + $0x198] sm:$0xff]
    %v1334 = vld [vmem:[%s15 + $0x1a0] sm:$0xf]
    %v1335 = vld [vmem:[%s15 + $0x1a4] sm:$0xff]
    %v1336 = vld [vmem:[%s15 + $0x1ac] sm:$0xff]
    %v1337 = vld [vmem:[%s15 + $0x1b4] sm:$0xff]
    %v1338 = vld [vmem:[%s15 + $0x1bc] sm:$0xf]
    %v1339 = vld [vmem:[%s16] sm:$0x7f]
    %v1341 = vlaneseq
    %v1342 = vshrl.u32 %v1341, 7
    %v1343 = vsub.s32 0, %v1342
    %v1344 = vrot.slane %v1339, %v1343
    %v1345 = vlaneseq
    %v1346 = vshrl.u32 %v1345, 7
    %v1347 = vsub.s32 1, %v1346
    %v1348 = vrot.slane %v1339, %v1347
    %v1349 = vlaneseq
    %v1350 = vshrl.u32 %v1349, 7
    %v1351 = vsub.s32 2, %v1350
    %v1352 = vrot.slane %v1339, %v1351
    %v1353 = vlaneseq
    %v1354 = vshrl.u32 %v1353, 7
    %v1355 = vsub.s32 3, %v1354
    %v1356 = vrot.slane %v1339, %v1355
    %v1357 = vlaneseq
    %v1358 = vshrl.u32 %v1357, 7
    %v1359 = vsub.s32 4, %v1358
    %v1360 = vrot.slane %v1339, %v1359
    %v1361 = vlaneseq
    %v1362 = vshrl.u32 %v1361, 7
    %v1363 = vsub.s32 5, %v1362
    %v1364 = vrot.slane %v1339, %v1363
    %v1365 = vlaneseq
    %v1366 = vshrl.u32 %v1365, 7
    %v1367 = vsub.s32 6, %v1366
    %v1368 = vrot.slane %v1339, %v1367
    %v1440 = vunpack.c.l.b16 %v1275
    %v1441 = vunpack.c.h.b16 %v1275
    %v1442 = vunpack.c.l.b16 %v1276
    %v1443 = vunpack.c.h.b16 %v1276
    %v1444 = vunpack.c.l.b16 %v1277
    %v1445 = vunpack.c.h.b16 %v1277
    %v1446 = vunpack.c.l.b16 %v1278
    %v1447 = vunpack.c.l.b16 %v1279
    %v1448 = vunpack.c.h.b16 %v1279
    %v1449 = vunpack.c.l.b16 %v1280
    %v1450 = vunpack.c.h.b16 %v1280
    %v1451 = vunpack.c.l.b16 %v1281
    %v1452 = vunpack.c.h.b16 %v1281
    %v1453 = vunpack.c.l.b16 %v1282
    %v1454 = vunpack.c.l.b16 %v1283
    %v1455 = vunpack.c.h.b16 %v1283
    %v1456 = vunpack.c.l.b16 %v1284
    %v1457 = vunpack.c.h.b16 %v1284
    %v1458 = vunpack.c.l.b16 %v1285
    %v1459 = vunpack.c.h.b16 %v1285
    %v1460 = vunpack.c.l.b16 %v1286
    %v1461 = vunpack.c.l.b16 %v1287
    %v1462 = vunpack.c.h.b16 %v1287
    %v1463 = vunpack.c.l.b16 %v1288
    %v1464 = vunpack.c.h.b16 %v1288
    %v1465 = vunpack.c.l.b16 %v1289
    %v1466 = vunpack.c.h.b16 %v1289
    %v1467 = vunpack.c.l.b16 %v1290
    %v1468 = vunpack.c.l.b16 %v1291
    %v1469 = vunpack.c.h.b16 %v1291
    %v1470 = vunpack.c.l.b16 %v1292
    %v1471 = vunpack.c.h.b16 %v1292
    %v1472 = vunpack.c.l.b16 %v1293
    %v1473 = vunpack.c.h.b16 %v1293
    %v1474 = vunpack.c.l.b16 %v1294
    %v1475 = vunpack.c.l.b16 %v1295
    %v1476 = vunpack.c.h.b16 %v1295
    %v1477 = vunpack.c.l.b16 %v1296
    %v1478 = vunpack.c.h.b16 %v1296
    %v1479 = vunpack.c.l.b16 %v1297
    %v1480 = vunpack.c.h.b16 %v1297
    %v1481 = vunpack.c.l.b16 %v1298
    %v1482 = vunpack.c.l.b16 %v1299
    %v1483 = vunpack.c.h.b16 %v1299
    %v1484 = vunpack.c.l.b16 %v1300
    %v1485 = vunpack.c.h.b16 %v1300
    %v1486 = vunpack.c.l.b16 %v1301
    %v1487 = vunpack.c.h.b16 %v1301
    %v1488 = vunpack.c.l.b16 %v1302
    %v1489 = vunpack.c.l.b16 %v1303
    %v1490 = vunpack.c.h.b16 %v1303
    %v1491 = vunpack.c.l.b16 %v1304
    %v1492 = vunpack.c.h.b16 %v1304
    %v1493 = vunpack.c.l.b16 %v1305
    %v1494 = vunpack.c.h.b16 %v1305
    %v1495 = vunpack.c.l.b16 %v1306
    %v1496 = vunpack.c.l.b16 %v1307
    %v1497 = vunpack.c.h.b16 %v1307
    %v1498 = vunpack.c.l.b16 %v1308
    %v1499 = vunpack.c.h.b16 %v1308
    %v1500 = vunpack.c.l.b16 %v1309
    %v1501 = vunpack.c.h.b16 %v1309
    %v1502 = vunpack.c.l.b16 %v1310
    %v1503 = vunpack.c.l.b16 %v1311
    %v1504 = vunpack.c.h.b16 %v1311
    %v1505 = vunpack.c.l.b16 %v1312
    %v1506 = vunpack.c.h.b16 %v1312
    %v1507 = vunpack.c.l.b16 %v1313
    %v1508 = vunpack.c.h.b16 %v1313
    %v1509 = vunpack.c.l.b16 %v1314
    %v1510 = vunpack.c.l.b16 %v1315
    %v1511 = vunpack.c.h.b16 %v1315
    %v1512 = vunpack.c.l.b16 %v1316
    %v1513 = vunpack.c.h.b16 %v1316
    %v1514 = vunpack.c.l.b16 %v1317
    %v1515 = vunpack.c.h.b16 %v1317
    %v1516 = vunpack.c.l.b16 %v1318
    %v1517 = vunpack.c.l.b16 %v1319
    %v1518 = vunpack.c.h.b16 %v1319
    %v1519 = vunpack.c.l.b16 %v1320
    %v1520 = vunpack.c.h.b16 %v1320
    %v1521 = vunpack.c.l.b16 %v1321
    %v1522 = vunpack.c.h.b16 %v1321
    %v1523 = vunpack.c.l.b16 %v1322
    %v1524 = vunpack.c.l.b16 %v1323
    %v1525 = vunpack.c.h.b16 %v1323
    %v1526 = vunpack.c.l.b16 %v1324
    %v1527 = vunpack.c.h.b16 %v1324
    %v1528 = vunpack.c.l.b16 %v1325
    %v1529 = vunpack.c.h.b16 %v1325
    %v1530 = vunpack.c.l.b16 %v1326
    %v1531 = vunpack.c.l.b16 %v1327
    %v1532 = vunpack.c.h.b16 %v1327
    %v1533 = vunpack.c.l.b16 %v1328
    %v1534 = vunpack.c.h.b16 %v1328
    %v1535 = vunpack.c.l.b16 %v1329
    %v1536 = vunpack.c.h.b16 %v1329
    %v1537 = vunpack.c.l.b16 %v1330
    %v1538 = vunpack.c.l.b16 %v1331
    %v1539 = vunpack.c.h.b16 %v1331
    %v1540 = vunpack.c.l.b16 %v1332
    %v1541 = vunpack.c.h.b16 %v1332
    %v1542 = vunpack.c.l.b16 %v1333
    %v1543 = vunpack.c.h.b16 %v1333
    %v1544 = vunpack.c.l.b16 %v1334
    %v1545 = vunpack.c.l.b16 %v1335
    %v1546 = vunpack.c.h.b16 %v1335
    %v1547 = vunpack.c.l.b16 %v1336
    %v1548 = vunpack.c.h.b16 %v1336
    %v1549 = vunpack.c.l.b16 %v1337
    %v1550 = vunpack.c.h.b16 %v1337
    %v1551 = vunpack.c.l.b16 %v1338
    %v1552 = vpack.c.b16 %v1447, %v1440
    %v1553 = vpack.c.b16 %v1448, %v1441
    %v1554 = vpack.c.b16 %v1449, %v1442
    %v1555 = vpack.c.b16 %v1450, %v1443
    %v1556 = vpack.c.b16 %v1451, %v1444
    %v1557 = vpack.c.b16 %v1452, %v1445
    %v1558 = vpack.c.b16 %v1453, %v1446
    %v1559 = vpack.c.b16 %v1461, %v1454
    %v1560 = vpack.c.b16 %v1462, %v1455
    %v1561 = vpack.c.b16 %v1463, %v1456
    %v1562 = vpack.c.b16 %v1464, %v1457
    %v1563 = vpack.c.b16 %v1465, %v1458
    %v1564 = vpack.c.b16 %v1466, %v1459
    %v1565 = vpack.c.b16 %v1467, %v1460
    %v1566 = vpack.c.b16 %v1475, %v1468
    %v1567 = vpack.c.b16 %v1476, %v1469
    %v1568 = vpack.c.b16 %v1477, %v1470
    %v1569 = vpack.c.b16 %v1478, %v1471
    %v1570 = vpack.c.b16 %v1479, %v1472
    %v1571 = vpack.c.b16 %v1480, %v1473
    %v1572 = vpack.c.b16 %v1481, %v1474
    %v1573 = vpack.c.b16 %v1489, %v1482
    %v1574 = vpack.c.b16 %v1490, %v1483
    %v1575 = vpack.c.b16 %v1491, %v1484
    %v1576 = vpack.c.b16 %v1492, %v1485
    %v1577 = vpack.c.b16 %v1493, %v1486
    %v1578 = vpack.c.b16 %v1494, %v1487
    %v1579 = vpack.c.b16 %v1495, %v1488
    %v1580 = vpack.c.b16 %v1503, %v1496
    %v1581 = vpack.c.b16 %v1504, %v1497
    %v1582 = vpack.c.b16 %v1505, %v1498
    %v1583 = vpack.c.b16 %v1506, %v1499
    %v1584 = vpack.c.b16 %v1507, %v1500
    %v1585 = vpack.c.b16 %v1508, %v1501
    %v1586 = vpack.c.b16 %v1509, %v1502
    %v1587 = vpack.c.b16 %v1517, %v1510
    %v1588 = vpack.c.b16 %v1518, %v1511
    %v1589 = vpack.c.b16 %v1519, %v1512
    %v1590 = vpack.c.b16 %v1520, %v1513
    %v1591 = vpack.c.b16 %v1521, %v1514
    %v1592 = vpack.c.b16 %v1522, %v1515
    %v1593 = vpack.c.b16 %v1523, %v1516
    %v1594 = vpack.c.b16 %v1531, %v1524
    %v1595 = vpack.c.b16 %v1532, %v1525
    %v1596 = vpack.c.b16 %v1533, %v1526
    %v1597 = vpack.c.b16 %v1534, %v1527
    %v1598 = vpack.c.b16 %v1535, %v1528
    %v1599 = vpack.c.b16 %v1536, %v1529
    %v1600 = vpack.c.b16 %v1537, %v1530
    %v1601 = vpack.c.b16 %v1545, %v1538
    %v1602 = vpack.c.b16 %v1546, %v1539
    %v1603 = vpack.c.b16 %v1547, %v1540
    %v1604 = vpack.c.b16 %v1548, %v1541
    %v1605 = vpack.c.b16 %v1549, %v1542
    %v1606 = vpack.c.b16 %v1550, %v1543
    %v1607 = vpack.c.b16 %v1551, %v1544
    %1664 = vmatprep.subr.bf16.mxu0 %v1553
    %1665 = vmatpush1.bf16.msra.mxu0 %v1552
    %1666 = vmatprep.subr.bf16.mxu0 %v1560
    %1667 = vmatpush1.bf16.msra.mxu0 %v1559
    %1668 = vmatprep.subr.bf16.mxu0 %v1567
    %1669 = vmatpush1.bf16.msra.mxu0 %v1566
    %1670 = vmatprep.subr.bf16.mxu0 %v1574
    %1671 = vmatpush1.bf16.msra.mxu0 %v1573
    %1672 = vmatprep.subr.bf16.mxu0 %v1581
    %1673 = vmatpush1.bf16.msra.mxu0 %v1580
    %1674 = vmatprep.subr.bf16.mxu0 %v1588
    %1675 = vmatpush1.bf16.msra.mxu0 %v1587
    %1676 = vmatprep.subr.bf16.mxu0 %v1595
    %1677 = vmatpush1.bf16.msra.mxu0 %v1594
    %1678 = vmatprep.subr.bf16.mxu0 %v1602
    %1679 = vmatpush1.bf16.msra.mxu0 %v1601
    %1680 = vmatprep.subr.bf16.mxu0 0
    %1681 = vmatpush1.bf16.msra.mxu0 0
    %1682 = vmatprep.subr.bf16.mxu0 0
    %1683 = vmatpush1.bf16.msra.mxu0 0
    %1684 = vmatprep.subr.bf16.mxu0 0
    %1685 = vmatpush1.bf16.msra.mxu0 0
    %1686 = vmatprep.subr.bf16.mxu0 0
    %1687 = vmatpush1.bf16.msra.mxu0 0
    %1688 = vmatprep.subr.bf16.mxu0 0
    %1689 = vmatpush1.bf16.msra.mxu0 0
    %1690 = vmatprep.subr.bf16.mxu0 0
    %1691 = vmatpush1.bf16.msra.mxu0 0
    %1692 = vmatprep.subr.bf16.mxu0 0
    %1693 = vmatpush1.bf16.msra.mxu0 0
    %1694 = vmatprep.subr.bf16.mxu0 0
    %1695 = vmatpush1.bf16.msra.mxu0 0
    %1696 = vmatprep.mubr.bf16.mxu0 0
    %1697 = vmatmul.mubr.bf16.gmra.mrb[0].mxu0 %v1274
    %v1698 = vpop.f32.mrb[0].mxu0
    %v1699 = vadd.f32 %v1344, %v1698
    %v1700 = vpop.f32.mrb[0].mxu0
    %v1701 = vadd.f32 %v1348, %v1700
    %v1702 = vpop.f32.mrb[0].mxu0
    %v1703 = vpop.f32.mrb[0].mxu0
    %1704 = vdwg.mxu0
    %1705 = vmatprep.subr.bf16.mxu0 %v1555
    %1706 = vmatpush1.bf16.msra.mxu0 %v1554
    %1707 = vmatprep.subr.bf16.mxu0 %v1562
    %1708 = vmatpush1.bf16.msra.mxu0 %v1561
    %1709 = vmatprep.subr.bf16.mxu0 %v1569
    %1710 = vmatpush1.bf16.msra.mxu0 %v1568
    %1711 = vmatprep.subr.bf16.mxu0 %v1576
    %1712 = vmatpush1.bf16.msra.mxu0 %v1575
    %1713 = vmatprep.subr.bf16.mxu0 %v1583
    %1714 = vmatpush1.bf16.msra.mxu0 %v1582
    %1715 = vmatprep.subr.bf16.mxu0 %v1590
    %1716 = vmatpush1.bf16.msra.mxu0 %v1589
    %1717 = vmatprep.subr.bf16.mxu0 %v1597
    %1718 = vmatpush1.bf16.msra.mxu0 %v1596
    %1719 = vmatprep.subr.bf16.mxu0 %v1604
    %1720 = vmatpush1.bf16.msra.mxu0 %v1603
    %1721 = vmatprep.subr.bf16.mxu0 0
    %1722 = vmatpush1.bf16.msra.mxu0 0
    %1723 = vmatprep.subr.bf16.mxu0 0
    %1724 = vmatpush1.bf16.msra.mxu0 0
    %1725 = vmatprep.subr.bf16.mxu0 0
    %1726 = vmatpush1.bf16.msra.mxu0 0
    %1727 = vmatprep.subr.bf16.mxu0 0
    %1728 = vmatpush1.bf16.msra.mxu0 0
    %1729 = vmatprep.subr.bf16.mxu0 0
    %1730 = vmatpush1.bf16.msra.mxu0 0
    %1731 = vmatprep.subr.bf16.mxu0 0
    %1732 = vmatpush1.bf16.msra.mxu0 0
    %1733 = vmatprep.subr.bf16.mxu0 0
    %1734 = vmatpush1.bf16.msra.mxu0 0
    %1735 = vmatprep.subr.bf16.mxu0 0
    %1736 = vmatpush1.bf16.msra.mxu0 0
    %1737 = vmatprep.mubr.bf16.mxu0 0
    %1738 = vmatmul.mubr.bf16.gmra.mrb[0].mxu0 %v1274
    %v1739 = vpop.f32.mrb[0].mxu0
    %v1740 = vadd.f32 %v1352, %v1739
    %v1741 = vpop.f32.mrb[0].mxu0
    %v1742 = vadd.f32 %v1356, %v1741
    %v1743 = vpop.f32.mrb[0].mxu0
    %v1744 = vpop.f32.mrb[0].mxu0
    %1745 = vdwg.mxu0
    %1746 = vmatprep.subr.bf16.mxu0 %v1557
    %1747 = vmatpush1.bf16.msra.mxu0 %v1556
    %1748 = vmatprep.subr.bf16.mxu0 %v1564
    %1749 = vmatpush1.bf16.msra.mxu0 %v1563
    %1750 = vmatprep.subr.bf16.mxu0 %v1571
    %1751 = vmatpush1.bf16.msra.mxu0 %v1570
    %1752 = vmatprep.subr.bf16.mxu0 %v1578
    %1753 = vmatpush1.bf16.msra.mxu0 %v1577
    %1754 = vmatprep.subr.bf16.mxu0 %v1585
    %1755 = vmatpush1.bf16.msra.mxu0 %v1584
    %1756 = vmatprep.subr.bf16.mxu0 %v1592
    %1757 = vmatpush1.bf16.msra.mxu0 %v1591
    %1758 = vmatprep.subr.bf16.mxu0 %v1599
    %1759 = vmatpush1.bf16.msra.mxu0 %v1598
    %1760 = vmatprep.subr.bf16.mxu0 %v1606
    %1761 = vmatpush1.bf16.msra.mxu0 %v1605
    %1762 = vmatprep.subr.bf16.mxu0 0
    %1763 = vmatpush1.bf16.msra.mxu0 0
    %1764 = vmatprep.subr.bf16.mxu0 0
    %1765 = vmatpush1.bf16.msra.mxu0 0
    %1766 = vmatprep.subr.bf16.mxu0 0
    %1767 = vmatpush1.bf16.msra.mxu0 0
    %1768 = vmatprep.subr.bf16.mxu0 0
    %1769 = vmatpush1.bf16.msra.mxu0 0
    %1770 = vmatprep.subr.bf16.mxu0 0
    %1771 = vmatpush1.bf16.msra.mxu0 0
    %1772 = vmatprep.subr.bf16.mxu0 0
    %1773 = vmatpush1.bf16.msra.mxu0 0
    %1774 = vmatprep.subr.bf16.mxu0 0
    %1775 = vmatpush1.bf16.msra.mxu0 0
    %1776 = vmatprep.subr.bf16.mxu0 0
    %1777 = vmatpush1.bf16.msra.mxu0 0
    %1778 = vmatprep.mubr.bf16.mxu0 0
    %1779 = vmatmul.mubr.bf16.gmra.mrb[0].mxu0 %v1274
    %v1780 = vpop.f32.mrb[0].mxu0
    %v1781 = vadd.f32 %v1360, %v1780
    %v1782 = vpop.f32.mrb[0].mxu0
    %v1783 = vadd.f32 %v1364, %v1782
    %v1784 = vpop.f32.mrb[0].mxu0
    %v1785 = vpop.f32.mrb[0].mxu0
    %1786 = vdwg.mxu0
    %1787 = vmatprep.subr.bf16.mxu0 0
    %1788 = vmatpush1.bf16.msra.mxu0 %v1558
    %1789 = vmatprep.subr.bf16.mxu0 0
    %1790 = vmatpush1.bf16.msra.mxu0 %v1565
    %1791 = vmatprep.subr.bf16.mxu0 0
    %1792 = vmatpush1.bf16.msra.mxu0 %v1572
    %1793 = vmatprep.subr.bf16.mxu0 0
    %1794 = vmatpush1.bf16.msra.mxu0 %v1579
    %1795 = vmatprep.subr.bf16.mxu0 0
    %1796 = vmatpush1.bf16.msra.mxu0 %v1586
    %1797 = vmatprep.subr.bf16.mxu0 0
    %1798 = vmatpush1.bf16.msra.mxu0 %v1593
    %1799 = vmatprep.subr.bf16.mxu0 0
    %1800 = vmatpush1.bf16.msra.mxu0 %v1600
    %1801 = vmatprep.subr.bf16.mxu0 0
    %1802 = vmatpush1.bf16.msra.mxu0 %v1607
    %1803 = vmatprep.subr.bf16.mxu0 0
    %1804 = vmatpush1.bf16.msra.mxu0 0
    %1805 = vmatprep.subr.bf16.mxu0 0
    %1806 = vmatpush1.bf16.msra.mxu0 0
    %1807 = vmatprep.subr.bf16.mxu0 0
    %1808 = vmatpush1.bf16.msra.mxu0 0
    %1809 = vmatprep.subr.bf16.mxu0 0
    %1810 = vmatpush1.bf16.msra.mxu0 0
    %1811 = vmatprep.subr.bf16.mxu0 0
    %1812 = vmatpush1.bf16.msra.mxu0 0
    %1813 = vmatprep.subr.bf16.mxu0 0
    %1814 = vmatpush1.bf16.msra.mxu0 0
    %1815 = vmatprep.subr.bf16.mxu0 0
    %1816 = vmatpush1.bf16.msra.mxu0 0
    %1817 = vmatprep.subr.bf16.mxu0 0
    %1818 = vmatpush1.bf16.msra.mxu0 0
    %1819 = vmatprep.mubr.bf16.mxu0 0
    %1820 = vmatmul.mubr.bf16.gmra.mrb[0].mxu0 %v1274
    %v1821 = vpop.f32.mrb[0].mxu0
    %v1822 = vadd.f32 %v1368, %v1821
    %v1823 = vpop.f32.mrb[0].mxu0
    %v1824 = vpop.f32.mrb[0].mxu0
    %v1825 = vpop.f32.mrb[0].mxu0
    %1826 = vdwg.mxu0
    %v1827 = vxor.u32 %v1699, 2147483648
    %v1828 = vxor.u32 %v1701, 2147483648
    %v1829 = vxor.u32 %v1740, 2147483648
    %v1830 = vxor.u32 %v1742, 2147483648
    %v1831 = vxor.u32 %v1781, 2147483648
    %v1832 = vxor.u32 %v1783, 2147483648
    %v1833 = vxor.u32 %v1822, 2147483648
    %v1834 = vmul.f32 %v1827, 1.442695
    %v1835 = vpow.pop %v1834
    %v1836 = vmul.f32 %v1828, 1.442695
    %v1837 = vpow.pop %v1836
    %v1838 = vmul.f32 %v1829, 1.442695
    %v1839 = vpow.pop %v1838
    %v1840 = vmul.f32 %v1830, 1.442695
    %v1841 = vpow.pop %v1840
    %v1842 = vmul.f32 %v1831, 1.442695
    %v1843 = vpow.pop %v1842
    %v1844 = vmul.f32 %v1832, 1.442695
    %v1845 = vpow.pop %v1844
    %v1846 = vmul.f32 %v1833, 1.442695
    %v1847 = vpow.pop %v1846
    %v1848 = vadd.f32 %v1835, 1.0
    %v1849 = vadd.f32 %v1837, 1.0
    %v1850 = vadd.f32 %v1839, 1.0
    %v1851 = vadd.f32 %v1841, 1.0
    %v1852 = vadd.f32 %v1843, 1.0
    %v1853 = vadd.f32 %v1845, 1.0
    %v1854 = vadd.f32 %v1847, 1.0
    %v1855 = vrcp.pop %v1848
    %v1856 = vmul.f32 1.0, %v1855
    %v1857 = vrcp.pop %v1849
    %v1858 = vmul.f32 1.0, %v1857
    %v1859 = vrcp.pop %v1850
    %v1860 = vmul.f32 1.0, %v1859
    %v1861 = vrcp.pop %v1851
    %v1862 = vmul.f32 1.0, %v1861
    %v1863 = vrcp.pop %v1852
    %v1864 = vmul.f32 1.0, %v1863
    %v1865 = vrcp.pop %v1853
    %v1866 = vmul.f32 1.0, %v1865
    %v1867 = vrcp.pop %v1854
    %v1868 = vmul.f32 1.0, %v1867
    %1869 = vst [vmem:[#allocation2] sm:$0xff] %v1856
    %1870 = vst [vmem:[#allocation2 + $0x8] sm:$0xff] %v1858
    %1871 = vst [vmem:[#allocation2 + $0x10] sm:$0xff] %v1860
    %1872 = vst [vmem:[#allocation2 + $0x18] sm:$0xff] %v1862
    %1873 = vst [vmem:[#allocation2 + $0x20] sm:$0xff] %v1864
    %1874 = vst [vmem:[#allocation2 + $0x28] sm:$0xff] %v1866
    %1875 = vst.msk [vmem:[#allocation2 + $0x30] sm:$0xff] %vm487, %v1868
    // Predicated region
    $region70: #{autoencoder_forward.1} parent=1 // pred_check
      _
    $region71: #{autoencoder_forward.1} parent=1 // pred_check_branch
      %1877 = sbr.rel (0) target = $region73
    $region72: #{autoencoder_forward.1} parent=1 // pred_region
      _
    $region73: #{autoencoder_forward.1} parent=1 // pred_fallthru
      _
    // Predicated region
    $region74: #{autoencoder_forward.1} parent=1 // pred_check
      _
    $region75: #{autoencoder_forward.1} parent=1 // pred_check_branch
      %1879 = sbr.rel (0) target = $region77
    $region76: #{autoencoder_forward.1} parent=1 // pred_region
      %s1881 = ssub.s32 896, 896
      %1882 = vsyncadd [#allocation3], %s1881
      %s1884 = sshll.u32 [#allocation2], 4
      %s1885 = int_to_ptr.vmem [resolvable:$true] %s1884
      %1887 = dma.vmem_to_hbm [thread:$0]  %s1885, 896, %s18, [#allocation3]
    $region77: #{autoencoder_forward.1} parent=1 // pred_fallthru
      _
    // Predicated region
    $region78: #{autoencoder_forward.1} parent=1 // pred_check
      _
    $region79: #{autoencoder_forward.1} parent=1 // pred_check_branch
      %1889 = sbr.rel (0) target = $region81
    $region80: #{autoencoder_forward.1} parent=1 // pred_region
      _
    $region81: #{autoencoder_forward.1} parent=1 // pred_fallthru
      _
    // Predicated region
    $region82: #{autoencoder_forward.1} parent=1 // pred_check
      _
    $region83: #{autoencoder_forward.1} parent=1 // pred_check_branch
      %1891 = sbr.rel (0) target = $region85
    $region84: #{autoencoder_forward.1} parent=1 // pred_region
      %1892 = dma.done [#allocation3], 896
    $region85: #{autoencoder_forward.1} parent=1 // pred_fallthru
      _
    %1893 = vsyncpa [#allocation3], 1

</llo_original>
